<compile_context>
chip_gen: v7x
topology: tpu7x:2x2x1
jax: 0.10.0
libtpu: 0.0.40
codegen_flags: <defaults>
</compile_context>

<pallas_src>
import jax
import jax.numpy as jnp
from jax import lax
from jax.experimental import pallas as pl
from jax.experimental.pallas import tpu as pltpu

F32 = jnp.float32


def _leaky(x, slope=0.1):
    # nn.LeakyReLU(0.1) in the reference module
    return jnp.where(x > 0, x, slope * x)


def _full_spec(a):
    nd = a.ndim
    return pl.BlockSpec(a.shape, lambda i, nd=nd: (0,) * nd)


def _pad_rows(a, mult=8):
    pad = (-a.shape[0]) % mult
    if pad:
        a = jnp.pad(a, ((0, pad),) + ((0, 0),) * (a.ndim - 1))
    return a


# ---------------------------------------------------------------------------
# Kernel 1: fused (hist+nbrs) input embedding + LeakyReLU + encoder LSTM
#           -> final hidden state for every row of the fused batch
# ---------------------------------------------------------------------------
def _enc_lstm_kernel(x_ref, wie_ref, bie_ref, wih_ref, whh_ref, bcomb_ref,
                     hout_ref):
    BT, E = hout_ref.shape
    T = x_ref.shape[0] // BT

    # Hoisted out of the recurrence: embedding + LeakyReLU + x-projection for
    # ALL timesteps at once (2 big matmuls instead of 2*T tiny latency-bound
    # ones), with the combined LSTM bias (b_ih + b_hh) folded in.
    emb = _leaky(jnp.dot(x_ref[...], wie_ref[...],
                         preferred_element_type=F32) + bie_ref[...])        # (T*BT, IE)
    xproj = jnp.dot(emb, wih_ref[...],
                    preferred_element_type=F32) + bcomb_ref[...]            # (T*BT, 4E)

    h = jnp.zeros((BT, E), F32)
    c = jnp.zeros((BT, E), F32)
    for t in range(T):                     # fully unrolled; static aligned slices
        gates = xproj[t * BT:(t + 1) * BT, :] + jnp.dot(
            h, whh_ref[...], preferred_element_type=F32)                    # (BT, 4E)
        sg = jax.nn.sigmoid(gates)         # one EUP pass over the whole gates tile
        tg = jnp.tanh(gates)               # one EUP pass over the whole gates tile
        i = sg[:, 0:E]
        f = sg[:, E:2 * E]
        g = tg[:, 2 * E:3 * E]
        o = sg[:, 3 * E:4 * E]
        c = f * c + i * g
        h = o * jnp.tanh(c)
    hout_ref[...] = h


def run_encoder(x2d, bt_pad, p):
    wie = p['w_inp'].T                      # (2, IE)
    bie = p['b_inp'][None, :]               # (1, IE)
    wih = p['w_ih_enc'].T                   # (IE, 4E)
    whh = p['w_hh_enc'].T                   # (E, 4E)
    bcomb = (p['b_ih_enc'] + p['b_hh_enc'])[None, :]   # (1, 4E)
    E = whh.shape[0]
    operands = (x2d, wie, bie, wih, whh, bcomb)
    return pl.pallas_call(
        _enc_lstm_kernel,
        out_shape=jax.ShapeDtypeStruct((bt_pad, E), F32),
        grid=(1,),
        in_specs=[_full_spec(a) for a in operands],
        out_specs=pl.BlockSpec((bt_pad, E), lambda i: (0, 0)),
        compiler_params=pltpu.CompilerParams(dimension_semantics=("arbitrary",)),
    )(*operands)


# ---------------------------------------------------------------------------
# Kernel 2: fused dym_ebd + spooling (LeakyReLU), decoder LSTM with constant
#           input (hoisted x-projection), output Linear + outputActivation
# ---------------------------------------------------------------------------
def _dec_kernel(hh_ref, soc_ref, wdym_ref, bdym_ref, wsp_ref, bsp_ref,
                wxd_ref, wxs_ref, bcomb_ref, whh_ref, wout_ref, bout_ref,
                out_ref, hseq_scr):
    Bp = hh_ref.shape[0]
    D = whh_ref.shape[0]
    T = out_ref.shape[0] // Bp

    # "fuse" stage (previously its own pallas_call)
    he = _leaky(jnp.dot(hh_ref[...], wdym_ref[...],
                        preferred_element_type=F32) + bdym_ref[...])        # (Bp, DYN)
    sh = _leaky(jnp.dot(soc_ref[...], wsp_ref[...],
                        preferred_element_type=F32) + bsp_ref[...])         # (Bp, SOC)

    # decoder input enc = [he | sh] is constant across steps -> hoist the
    # x-projection and avoid materializing the concat by splitting W_ih.
    xp = (jnp.dot(he, wxd_ref[...], preferred_element_type=F32)
          + jnp.dot(sh, wxs_ref[...], preferred_element_type=F32)
          + bcomb_ref[...])                                                 # (Bp, 4D)

    h = jnp.zeros((Bp, D), F32)
    c = jnp.zeros((Bp, D), F32)
    for t in range(T):                     # fully unrolled recurrence
        gates = xp + jnp.dot(h, whh_ref[...], preferred_element_type=F32)
        sg = jax.nn.sigmoid(gates)
        tg = jnp.tanh(gates)
        i = sg[:, 0:D]
        f = sg[:, D:2 * D]
        g = tg[:, 2 * D:3 * D]
        o = sg[:, 3 * D:4 * D]
        c = f * c + i * g
        h = o * jnp.tanh(c)
        hseq_scr[t * Bp:(t + 1) * Bp, :] = h      # static, tile-aligned store

    # Output head hoisted out of the loop: one matmul + one activation pass.
    out5 = jnp.dot(hseq_scr[...], wout_ref[...],
                   preferred_element_type=F32) + bout_ref[...]              # (T*Bp, 5)
    col = lax.broadcasted_iota(jnp.int32, out5.shape, 1)
    # outputActivation: cols 0,1 identity; cols 2,3 exp; col 4 tanh
    out_ref[...] = jnp.where(col < 2, out5,
                             jnp.where(col < 4, jnp.exp(out5), jnp.tanh(out5)))


def run_decoder(hist_hidden_p, soc_p, p, cfg):
    Bp = hist_hidden_p.shape[0]
    GH, GW = cfg['grid_size']
    DYN, E = p['w_dym'].shape
    SOC = p['w_sp'].shape[0]
    D = p['w_hh_dec'].shape[1]
    T = cfg['input_length']     # reference module: enc.repeat(self.input_length, 1, 1)

    wdym = p['w_dym'].T                     # (E, DYN)
    bdym = p['b_dym'][None, :]
    # Fold the permute(0,3,2,1) of soc_enc into the spooling weight: reorder
    # W_sp's input dim from (E, GW, GH) order to the natural (GH, GW, E) order.
    wsp_nat = (p['w_sp'].T.reshape(E, GW, GH, SOC)
               .transpose(2, 1, 0, 3).reshape(GH * GW * E, SOC))
    bsp = p['b_sp'][None, :]
    w_ih_T = p['w_ih_dec'].T                # (DYN+SOC, 4D); enc = [dym | soc]
    wxd = w_ih_T[:DYN, :]
    wxs = w_ih_T[DYN:, :]
    bcomb = (p['b_ih_dec'] + p['b_hh_dec'])[None, :]
    whh = p['w_hh_dec'].T                   # (D, 4D)
    wout = p['w_out'].T                     # (D, 5)
    bout = p['b_out'][None, :]

    operands = (hist_hidden_p, soc_p, wdym, bdym, wsp_nat, bsp,
                wxd, wxs, bcomb, whh, wout, bout)
    return pl.pallas_call(
        _dec_kernel,
        out_shape=jax.ShapeDtypeStruct((T * Bp, 5), F32),
        grid=(1,),
        in_specs=[_full_spec(a) for a in operands],
        out_specs=pl.BlockSpec((T * Bp, 5), lambda i: (0, 0)),
        scratch_shapes=[pltpu.VMEM((T * Bp, D), F32)],
        compiler_params=pltpu.CompilerParams(dimension_semantics=("arbitrary",)),
    )(*operands)


# ---------------------------------------------------------------------------
# Full forward pass (tiny glue in plain JAX, hot paths in 2 Pallas kernels)
# ---------------------------------------------------------------------------
def social_lstm_forward(p, cfg, hist_batch, nbrs_batch, mask_batch):
    E = cfg['encoder_size']
    GH, GW = cfg['grid_size']
    T, B, _ = hist_batch.shape
    N = nbrs_batch.shape[1]

    # ---- fused encoder: hist + nbrs share weights -> run as one padded batch
    x_all = jnp.concatenate([hist_batch, nbrs_batch], axis=1)       # (T, B+N, 2)
    bt_pad = ((B + N + 7) // 8) * 8
    x_all = jnp.pad(x_all, ((0, 0), (0, bt_pad - (B + N)), (0, 0)))
    x2d = x_all.reshape(T * bt_pad, 2)                              # time-major flat
    h_all = run_encoder(x2d, bt_pad, p)                             # (bt_pad, E)
    hist_hidden = h_all[:B]                                         # (B, E)
    nbrs_hidden = h_all[B:B + N]                                    # (N, E)

    # ---- masked_scatter_ semantics in plain JAX (data-dependent scatter)
    # TODO(synk): data-dependent scatter kept in plain JAX; assumes the mask has
    #             exactly N*E True elements (E contiguous Trues per occupied
    #             cell), the standard social-pooling usage.
    mask_flat = mask_batch.reshape(-1)
    src_flat = nbrs_hidden.reshape(-1)
    pos = jnp.cumsum(mask_flat.astype(jnp.int32)) - 1
    pos = jnp.clip(pos, 0, src_flat.shape[0] - 1)
    soc_nat = jnp.where(mask_flat, src_flat[pos], 0.0).reshape(B, GH * GW * E)
    # (the reference's permute(0,3,2,1) is folded into the spooling weight)

    # ---- fused dym_ebd + spooling + decoder LSTM + output head
    b_pad = ((B + 7) // 8) * 8
    hh_p = _pad_rows(hist_hidden)                                   # (b_pad, E)
    soc_p = _pad_rows(soc_nat)                                      # (b_pad, GH*GW*E)
    T_dec = cfg['input_length']
    dec = run_decoder(hh_p, soc_p, p, cfg)                          # (T_dec*b_pad, 5)
    dec = dec.reshape(T_dec, b_pad, 5)[:, :B, :]                    # (T_dec, B, 5)
    return jnp.transpose(dec, (1, 0, 2))                            # (B, T_dec, 5)


def init_params(key, cfg):
    IE = cfg['input_embedding']
    E = cfg['encoder_size']
    DYN = cfg['dynamic_embedding']
    SOC = cfg['soc_embedding_size']
    D = cfg['decoder_size']
    GH, GW = cfg['grid_size']

    def u(k, shape):
        return jax.random.uniform(k, shape, F32, -0.1, 0.1)

    ks = jax.random.split(key, 16)
    return {
        'w_inp': u(ks[0], (IE, 2)),            'b_inp': u(ks[1], (IE,)),
        'w_ih_enc': u(ks[2], (4 * E, IE)),     'w_hh_enc': u(ks[3], (4 * E, E)),
        'b_ih_enc': u(ks[4], (4 * E,)),        'b_hh_enc': u(ks[5], (4 * E,)),
        'w_dym': u(ks[6], (DYN, E)),           'b_dym': u(ks[7], (DYN,)),
        'w_sp': u(ks[8], (SOC, GH * GW * E)),  'b_sp': u(ks[9], (SOC,)),
        'w_ih_dec': u(ks[10], (4 * D, DYN + SOC)), 'w_hh_dec': u(ks[11], (4 * D, D)),
        'b_ih_dec': u(ks[12], (4 * D,)),       'b_hh_dec': u(ks[13], (4 * D,)),
        'w_out': u(ks[14], (5, D)),            'b_out': u(ks[15], (5,)),
    }


if __name__ == "__main__":
    args = dict(use_cuda=False, input_embedding=32, encoder_size=32, decoder_size=32,
                dynamic_embedding=32, grid_size=(4, 4), input_length=8,
                output_length=8, soc_embedding_size=32)

    key = jax.random.PRNGKey(0)
    pkey, hkey, nkey = jax.random.split(key, 3)
    params = init_params(pkey, args)

    T, B, N = 8, 4, 6
    GH, GW = args['grid_size']
    E = args['encoder_size']

    hist_batch = jax.random.normal(hkey, (T, B, 2), F32)
    nbrs_batch = jax.random.normal(nkey, (T, N, 2), F32)

    # boolean occupancy mask: N occupied grid cells (all encoder_size lanes True)
    occ_idx = jnp.array([1, 5, 18, 23, 40, 55], dtype=jnp.int32)
    cell_occ = jnp.zeros((B * GH * GW,), dtype=bool).at[occ_idx].set(True)
    mask_batch = jnp.broadcast_to(cell_occ.reshape(B, GH, GW, 1), (B, GH, GW, E))

    out = social_lstm_forward(params, args, hist_batch, nbrs_batch, mask_batch)
    out = jax.block_until_ready(out)
    assert out.shape == (B, args['input_length'], 5)
    assert jnp.all(jnp.isfinite(out))
    print("KERNEL_OK")
</pallas_src>

<mosaic_0001>
module attributes {stable_mosaic.version = 11 : i64} {
  func.func @_enc_lstm_kernel(%arg0: i32, %arg1: memref<128x2xf32, #tpu.memory_space<vmem>>, %arg2: memref<2x32xf32, #tpu.memory_space<vmem>>, %arg3: memref<1x32xf32, #tpu.memory_space<vmem>>, %arg4: memref<32x128xf32, #tpu.memory_space<vmem>>, %arg5: memref<32x128xf32, #tpu.memory_space<vmem>>, %arg6: memref<1x128xf32, #tpu.memory_space<vmem>>, %arg7: memref<16x32xf32, #tpu.memory_space<vmem>>) attributes {dimension_semantics = [#tpu.dimension_semantics<arbitrary>], iteration_bounds = array<i64: 1>, scalar_prefetch = 0 : i64, scratch_operands = 0 : i64, tpu.core_type = #tpu.core_type<tc>, window_params = [{pipeline_mode = #tpu.pipeline_mode<synchronous>, transform_indices = @transform_0, window_bounds = array<i64: 128, 2>}, {pipeline_mode = #tpu.pipeline_mode<synchronous>, transform_indices = @transform_1, window_bounds = array<i64: 2, 32>}, {pipeline_mode = #tpu.pipeline_mode<synchronous>, transform_indices = @transform_2, window_bounds = array<i64: 1, 32>}, {pipeline_mode = #tpu.pipeline_mode<synchronous>, transform_indices = @transform_3, window_bounds = array<i64: 32, 128>}, {pipeline_mode = #tpu.pipeline_mode<synchronous>, transform_indices = @transform_4, window_bounds = array<i64: 32, 128>}, {pipeline_mode = #tpu.pipeline_mode<synchronous>, transform_indices = @transform_5, window_bounds = array<i64: 1, 128>}, {pipeline_mode = #tpu.pipeline_mode<synchronous>, transform_indices = @transform_6, window_bounds = array<i64: 16, 32>}]} {
    %c0 = arith.constant 0 : index
    %c0_0 = arith.constant 0 : index
    %0 = vector.load %arg1[%c0, %c0_0] : memref<128x2xf32, #tpu.memory_space<vmem>>, vector<128x2xf32>
    %c0_1 = arith.constant 0 : index
    %c0_2 = arith.constant 0 : index
    %1 = vector.load %arg2[%c0_1, %c0_2] : memref<2x32xf32, #tpu.memory_space<vmem>>, vector<2x32xf32>
    %cst = arith.constant dense<0.000000e+00> : vector<128x32xf32>
    %2 = tpu.matmul %0, %1, %cst {dimension_numbers = #tpu.dot_dimension_numbers<[1], [0], [0], [1], [0, 0, 1, 1], [], []>} : vector<128x2xf32>, vector<2x32xf32>, vector<128x32xf32> -> vector<128x32xf32>
    %c0_3 = arith.constant 0 : index
    %c0_4 = arith.constant 0 : index
    %3 = vector.load %arg3[%c0_3, %c0_4] : memref<1x32xf32, #tpu.memory_space<vmem>>, vector<1x32xf32>
    %4 = vector.broadcast %3 : vector<1x32xf32> to vector<128x32xf32>
    %5 = arith.addf %2, %4 : vector<128x32xf32>
    %cst_5 = arith.constant 0.000000e+00 : f32
    %6 = vector.broadcast %cst_5 : f32 to vector<128x32xf32>
    %7 = arith.cmpf ogt, %5, %6 : vector<128x32xf32>
    %cst_6 = arith.constant 1.000000e-01 : f32
    %8 = vector.broadcast %cst_6 : f32 to vector<128x32xf32>
    %9 = arith.mulf %8, %5 : vector<128x32xf32>
    %10 = arith.select %7, %5, %9 : vector<128x32xi1>, vector<128x32xf32>
    %c0_7 = arith.constant 0 : index
    %c0_8 = arith.constant 0 : index
    %11 = vector.load %arg4[%c0_7, %c0_8] : memref<32x128xf32, #tpu.memory_space<vmem>>, vector<32x128xf32>
    %cst_9 = arith.constant dense<0.000000e+00> : vector<128x128xf32>
    %12 = tpu.matmul %10, %11, %cst_9 {dimension_numbers = #tpu.dot_dimension_numbers<[1], [0], [0], [1], [0, 0, 1, 1], [], []>} : vector<128x32xf32>, vector<32x128xf32>, vector<128x128xf32> -> vector<128x128xf32>
    %c0_10 = arith.constant 0 : index
    %c0_11 = arith.constant 0 : index
    %13 = vector.load %arg6[%c0_10, %c0_11] : memref<1x128xf32, #tpu.memory_space<vmem>>, vector<1x128xf32>
    %14 = vector.broadcast %13 : vector<1x128xf32> to vector<128x128xf32>
    %15 = arith.addf %12, %14 : vector<128x128xf32>
    %cst_12 = arith.constant 0.000000e+00 : f32
    %16 = vector.broadcast %cst_12 : f32 to vector<16x32xf32>
    %cst_13 = arith.constant 0.000000e+00 : f32
    %17 = vector.broadcast %cst_13 : f32 to vector<16x32xf32>
    %18 = vector.extract_strided_slice %15 {offsets = [0, 0], sizes = [16, 128], strides = [1, 1]} : vector<128x128xf32> to vector<16x128xf32>
    %c0_14 = arith.constant 0 : index
    %c0_15 = arith.constant 0 : index
    %19 = vector.load %arg5[%c0_14, %c0_15] : memref<32x128xf32, #tpu.memory_space<vmem>>, vector<32x128xf32>
    %cst_16 = arith.constant dense<0.000000e+00> : vector<16x128xf32>
    %20 = tpu.matmul %16, %19, %cst_16 {dimension_numbers = #tpu.dot_dimension_numbers<[1], [0], [0], [1], [0, 0, 1, 1], [], []>} : vector<16x32xf32>, vector<32x128xf32>, vector<16x128xf32> -> vector<16x128xf32>
    %21 = arith.addf %18, %20 : vector<16x128xf32>
    %22 = arith.negf %21 : vector<16x128xf32>
    %23 = math.exp %22 : vector<16x128xf32>
    %cst_17 = arith.constant 1.000000e+00 : f32
    %24 = vector.broadcast %cst_17 : f32 to vector<16x128xf32>
    %25 = arith.addf %24, %23 : vector<16x128xf32>
    %26 = arith.divf %24, %25 : vector<16x128xf32>
    %27 = math.tanh %21 : vector<16x128xf32>
    %28 = vector.extract_strided_slice %26 {offsets = [0, 0], sizes = [16, 32], strides = [1, 1]} : vector<16x128xf32> to vector<16x32xf32>
    %29 = vector.extract_strided_slice %26 {offsets = [0, 32], sizes = [16, 32], strides = [1, 1]} : vector<16x128xf32> to vector<16x32xf32>
    %30 = vector.extract_strided_slice %27 {offsets = [0, 64], sizes = [16, 32], strides = [1, 1]} : vector<16x128xf32> to vector<16x32xf32>
    %31 = vector.extract_strided_slice %26 {offsets = [0, 96], sizes = [16, 32], strides = [1, 1]} : vector<16x128xf32> to vector<16x32xf32>
    %32 = arith.mulf %29, %17 : vector<16x32xf32>
    %33 = arith.mulf %28, %30 : vector<16x32xf32>
    %34 = arith.addf %32, %33 : vector<16x32xf32>
    %35 = math.tanh %34 : vector<16x32xf32>
    %36 = arith.mulf %31, %35 : vector<16x32xf32>
    %37 = vector.extract_strided_slice %15 {offsets = [16, 0], sizes = [16, 128], strides = [1, 1]} : vector<128x128xf32> to vector<16x128xf32>
    %c0_18 = arith.constant 0 : index
    %c0_19 = arith.constant 0 : index
    %38 = vector.load %arg5[%c0_18, %c0_19] : memref<32x128xf32, #tpu.memory_space<vmem>>, vector<32x128xf32>
    %cst_20 = arith.constant dense<0.000000e+00> : vector<16x128xf32>
    %39 = tpu.matmul %36, %38, %cst_20 {dimension_numbers = #tpu.dot_dimension_numbers<[1], [0], [0], [1], [0, 0, 1, 1], [], []>} : vector<16x32xf32>, vector<32x128xf32>, vector<16x128xf32> -> vector<16x128xf32>
    %40 = arith.addf %37, %39 : vector<16x128xf32>
    %41 = arith.negf %40 : vector<16x128xf32>
    %42 = math.exp %41 : vector<16x128xf32>
    %cst_21 = arith.constant 1.000000e+00 : f32
    %43 = vector.broadcast %cst_21 : f32 to vector<16x128xf32>
    %44 = arith.addf %43, %42 : vector<16x128xf32>
    %45 = arith.divf %43, %44 : vector<16x128xf32>
    %46 = math.tanh %40 : vector<16x128xf32>
    %47 = vector.extract_strided_slice %45 {offsets = [0, 0], sizes = [16, 32], strides = [1, 1]} : vector<16x128xf32> to vector<16x32xf32>
    %48 = vector.extract_strided_slice %45 {offsets = [0, 32], sizes = [16, 32], strides = [1, 1]} : vector<16x128xf32> to vector<16x32xf32>
    %49 = vector.extract_strided_slice %46 {offsets = [0, 64], sizes = [16, 32], strides = [1, 1]} : vector<16x128xf32> to vector<16x32xf32>
    %50 = vector.extract_strided_slice %45 {offsets = [0, 96], sizes = [16, 32], strides = [1, 1]} : vector<16x128xf32> to vector<16x32xf32>
    %51 = arith.mulf %48, %34 : vector<16x32xf32>
    %52 = arith.mulf %47, %49 : vector<16x32xf32>
    %53 = arith.addf %51, %52 : vector<16x32xf32>
    %54 = math.tanh %53 : vector<16x32xf32>
    %55 = arith.mulf %50, %54 : vector<16x32xf32>
    %56 = vector.extract_strided_slice %15 {offsets = [32, 0], sizes = [16, 128], strides = [1, 1]} : vector<128x128xf32> to vector<16x128xf32>
    %c0_22 = arith.constant 0 : index
    %c0_23 = arith.constant 0 : index
    %57 = vector.load %arg5[%c0_22, %c0_23] : memref<32x128xf32, #tpu.memory_space<vmem>>, vector<32x128xf32>
    %cst_24 = arith.constant dense<0.000000e+00> : vector<16x128xf32>
    %58 = tpu.matmul %55, %57, %cst_24 {dimension_numbers = #tpu.dot_dimension_numbers<[1], [0], [0], [1], [0, 0, 1, 1], [], []>} : vector<16x32xf32>, vector<32x128xf32>, vector<16x128xf32> -> vector<16x128xf32>
    %59 = arith.addf %56, %58 : vector<16x128xf32>
    %60 = arith.negf %59 : vector<16x128xf32>
    %61 = math.exp %60 : vector<16x128xf32>
    %cst_25 = arith.constant 1.000000e+00 : f32
    %62 = vector.broadcast %cst_25 : f32 to vector<16x128xf32>
    %63 = arith.addf %62, %61 : vector<16x128xf32>
    %64 = arith.divf %62, %63 : vector<16x128xf32>
    %65 = math.tanh %59 : vector<16x128xf32>
    %66 = vector.extract_strided_slice %64 {offsets = [0, 0], sizes = [16, 32], strides = [1, 1]} : vector<16x128xf32> to vector<16x32xf32>
    %67 = vector.extract_strided_slice %64 {offsets = [0, 32], sizes = [16, 32], strides = [1, 1]} : vector<16x128xf32> to vector<16x32xf32>
    %68 = vector.extract_strided_slice %65 {offsets = [0, 64], sizes = [16, 32], strides = [1, 1]} : vector<16x128xf32> to vector<16x32xf32>
    %69 = vector.extract_strided_slice %64 {offsets = [0, 96], sizes = [16, 32], strides = [1, 1]} : vector<16x128xf32> to vector<16x32xf32>
    %70 = arith.mulf %67, %53 : vector<16x32xf32>
    %71 = arith.mulf %66, %68 : vector<16x32xf32>
    %72 = arith.addf %70, %71 : vector<16x32xf32>
    %73 = math.tanh %72 : vector<16x32xf32>
    %74 = arith.mulf %69, %73 : vector<16x32xf32>
    %75 = vector.extract_strided_slice %15 {offsets = [48, 0], sizes = [16, 128], strides = [1, 1]} : vector<128x128xf32> to vector<16x128xf32>
    %c0_26 = arith.constant 0 : index
    %c0_27 = arith.constant 0 : index
    %76 = vector.load %arg5[%c0_26, %c0_27] : memref<32x128xf32, #tpu.memory_space<vmem>>, vector<32x128xf32>
    %cst_28 = arith.constant dense<0.000000e+00> : vector<16x128xf32>
    %77 = tpu.matmul %74, %76, %cst_28 {dimension_numbers = #tpu.dot_dimension_numbers<[1], [0], [0], [1], [0, 0, 1, 1], [], []>} : vector<16x32xf32>, vector<32x128xf32>, vector<16x128xf32> -> vector<16x128xf32>
    %78 = arith.addf %75, %77 : vector<16x128xf32>
    %79 = arith.negf %78 : vector<16x128xf32>
    %80 = math.exp %79 : vector<16x128xf32>
    %cst_29 = arith.constant 1.000000e+00 : f32
    %81 = vector.broadcast %cst_29 : f32 to vector<16x128xf32>
    %82 = arith.addf %81, %80 : vector<16x128xf32>
    %83 = arith.divf %81, %82 : vector<16x128xf32>
    %84 = math.tanh %78 : vector<16x128xf32>
    %85 = vector.extract_strided_slice %83 {offsets = [0, 0], sizes = [16, 32], strides = [1, 1]} : vector<16x128xf32> to vector<16x32xf32>
    %86 = vector.extract_strided_slice %83 {offsets = [0, 32], sizes = [16, 32], strides = [1, 1]} : vector<16x128xf32> to vector<16x32xf32>
    %87 = vector.extract_strided_slice %84 {offsets = [0, 64], sizes = [16, 32], strides = [1, 1]} : vector<16x128xf32> to vector<16x32xf32>
    %88 = vector.extract_strided_slice %83 {offsets = [0, 96], sizes = [16, 32], strides = [1, 1]} : vector<16x128xf32> to vector<16x32xf32>
    %89 = arith.mulf %86, %72 : vector<16x32xf32>
    %90 = arith.mulf %85, %87 : vector<16x32xf32>
    %91 = arith.addf %89, %90 : vector<16x32xf32>
    %92 = math.tanh %91 : vector<16x32xf32>
    %93 = arith.mulf %88, %92 : vector<16x32xf32>
    %94 = vector.extract_strided_slice %15 {offsets = [64, 0], sizes = [16, 128], strides = [1, 1]} : vector<128x128xf32> to vector<16x128xf32>
    %c0_30 = arith.constant 0 : index
    %c0_31 = arith.constant 0 : index
    %95 = vector.load %arg5[%c0_30, %c0_31] : memref<32x128xf32, #tpu.memory_space<vmem>>, vector<32x128xf32>
    %cst_32 = arith.constant dense<0.000000e+00> : vector<16x128xf32>
    %96 = tpu.matmul %93, %95, %cst_32 {dimension_numbers = #tpu.dot_dimension_numbers<[1], [0], [0], [1], [0, 0, 1, 1], [], []>} : vector<16x32xf32>, vector<32x128xf32>, vector<16x128xf32> -> vector<16x128xf32>
    %97 = arith.addf %94, %96 : vector<16x128xf32>
    %98 = arith.negf %97 : vector<16x128xf32>
    %99 = math.exp %98 : vector<16x128xf32>
    %cst_33 = arith.constant 1.000000e+00 : f32
    %100 = vector.broadcast %cst_33 : f32 to vector<16x128xf32>
    %101 = arith.addf %100, %99 : vector<16x128xf32>
    %102 = arith.divf %100, %101 : vector<16x128xf32>
    %103 = math.tanh %97 : vector<16x128xf32>
    %104 = vector.extract_strided_slice %102 {offsets = [0, 0], sizes = [16, 32], strides = [1, 1]} : vector<16x128xf32> to vector<16x32xf32>
    %105 = vector.extract_strided_slice %102 {offsets = [0, 32], sizes = [16, 32], strides = [1, 1]} : vector<16x128xf32> to vector<16x32xf32>
    %106 = vector.extract_strided_slice %103 {offsets = [0, 64], sizes = [16, 32], strides = [1, 1]} : vector<16x128xf32> to vector<16x32xf32>
    %107 = vector.extract_strided_slice %102 {offsets = [0, 96], sizes = [16, 32], strides = [1, 1]} : vector<16x128xf32> to vector<16x32xf32>
    %108 = arith.mulf %105, %91 : vector<16x32xf32>
    %109 = arith.mulf %104, %106 : vector<16x32xf32>
    %110 = arith.addf %108, %109 : vector<16x32xf32>
    %111 = math.tanh %110 : vector<16x32xf32>
    %112 = arith.mulf %107, %111 : vector<16x32xf32>
    %113 = vector.extract_strided_slice %15 {offsets = [80, 0], sizes = [16, 128], strides = [1, 1]} : vector<128x128xf32> to vector<16x128xf32>
    %c0_34 = arith.constant 0 : index
    %c0_35 = arith.constant 0 : index
    %114 = vector.load %arg5[%c0_34, %c0_35] : memref<32x128xf32, #tpu.memory_space<vmem>>, vector<32x128xf32>
    %cst_36 = arith.constant dense<0.000000e+00> : vector<16x128xf32>
    %115 = tpu.matmul %112, %114, %cst_36 {dimension_numbers = #tpu.dot_dimension_numbers<[1], [0], [0], [1], [0, 0, 1, 1], [], []>} : vector<16x32xf32>, vector<32x128xf32>, vector<16x128xf32> -> vector<16x128xf32>
    %116 = arith.addf %113, %115 : vector<16x128xf32>
    %117 = arith.negf %116 : vector<16x128xf32>
    %118 = math.exp %117 : vector<16x128xf32>
    %cst_37 = arith.constant 1.000000e+00 : f32
    %119 = vector.broadcast %cst_37 : f32 to vector<16x128xf32>
    %120 = arith.addf %119, %118 : vector<16x128xf32>
    %121 = arith.divf %119, %120 : vector<16x128xf32>
    %122 = math.tanh %116 : vector<16x128xf32>
    %123 = vector.extract_strided_slice %121 {offsets = [0, 0], sizes = [16, 32], strides = [1, 1]} : vector<16x128xf32> to vector<16x32xf32>
    %124 = vector.extract_strided_slice %121 {offsets = [0, 32], sizes = [16, 32], strides = [1, 1]} : vector<16x128xf32> to vector<16x32xf32>
    %125 = vector.extract_strided_slice %122 {offsets = [0, 64], sizes = [16, 32], strides = [1, 1]} : vector<16x128xf32> to vector<16x32xf32>
    %126 = vector.extract_strided_slice %121 {offsets = [0, 96], sizes = [16, 32], strides = [1, 1]} : vector<16x128xf32> to vector<16x32xf32>
    %127 = arith.mulf %124, %110 : vector<16x32xf32>
    %128 = arith.mulf %123, %125 : vector<16x32xf32>
    %129 = arith.addf %127, %128 : vector<16x32xf32>
    %130 = math.tanh %129 : vector<16x32xf32>
    %131 = arith.mulf %126, %130 : vector<16x32xf32>
    %132 = vector.extract_strided_slice %15 {offsets = [96, 0], sizes = [16, 128], strides = [1, 1]} : vector<128x128xf32> to vector<16x128xf32>
    %c0_38 = arith.constant 0 : index
    %c0_39 = arith.constant 0 : index
    %133 = vector.load %arg5[%c0_38, %c0_39] : memref<32x128xf32, #tpu.memory_space<vmem>>, vector<32x128xf32>
    %cst_40 = arith.constant dense<0.000000e+00> : vector<16x128xf32>
    %134 = tpu.matmul %131, %133, %cst_40 {dimension_numbers = #tpu.dot_dimension_numbers<[1], [0], [0], [1], [0, 0, 1, 1], [], []>} : vector<16x32xf32>, vector<32x128xf32>, vector<16x128xf32> -> vector<16x128xf32>
    %135 = arith.addf %132, %134 : vector<16x128xf32>
    %136 = arith.negf %135 : vector<16x128xf32>
    %137 = math.exp %136 : vector<16x128xf32>
    %cst_41 = arith.constant 1.000000e+00 : f32
    %138 = vector.broadcast %cst_41 : f32 to vector<16x128xf32>
    %139 = arith.addf %138, %137 : vector<16x128xf32>
    %140 = arith.divf %138, %139 : vector<16x128xf32>
    %141 = math.tanh %135 : vector<16x128xf32>
    %142 = vector.extract_strided_slice %140 {offsets = [0, 0], sizes = [16, 32], strides = [1, 1]} : vector<16x128xf32> to vector<16x32xf32>
    %143 = vector.extract_strided_slice %140 {offsets = [0, 32], sizes = [16, 32], strides = [1, 1]} : vector<16x128xf32> to vector<16x32xf32>
    %144 = vector.extract_strided_slice %141 {offsets = [0, 64], sizes = [16, 32], strides = [1, 1]} : vector<16x128xf32> to vector<16x32xf32>
    %145 = vector.extract_strided_slice %140 {offsets = [0, 96], sizes = [16, 32], strides = [1, 1]} : vector<16x128xf32> to vector<16x32xf32>
    %146 = arith.mulf %143, %129 : vector<16x32xf32>
    %147 = arith.mulf %142, %144 : vector<16x32xf32>
    %148 = arith.addf %146, %147 : vector<16x32xf32>
    %149 = math.tanh %148 : vector<16x32xf32>
    %150 = arith.mulf %145, %149 : vector<16x32xf32>
    %151 = vector.extract_strided_slice %15 {offsets = [112, 0], sizes = [16, 128], strides = [1, 1]} : vector<128x128xf32> to vector<16x128xf32>
    %c0_42 = arith.constant 0 : index
    %c0_43 = arith.constant 0 : index
    %152 = vector.load %arg5[%c0_42, %c0_43] : memref<32x128xf32, #tpu.memory_space<vmem>>, vector<32x128xf32>
    %cst_44 = arith.constant dense<0.000000e+00> : vector<16x128xf32>
    %153 = tpu.matmul %150, %152, %cst_44 {dimension_numbers = #tpu.dot_dimension_numbers<[1], [0], [0], [1], [0, 0, 1, 1], [], []>} : vector<16x32xf32>, vector<32x128xf32>, vector<16x128xf32> -> vector<16x128xf32>
    %154 = arith.addf %151, %153 : vector<16x128xf32>
    %155 = arith.negf %154 : vector<16x128xf32>
    %156 = math.exp %155 : vector<16x128xf32>
    %cst_45 = arith.constant 1.000000e+00 : f32
    %157 = vector.broadcast %cst_45 : f32 to vector<16x128xf32>
    %158 = arith.addf %157, %156 : vector<16x128xf32>
    %159 = arith.divf %157, %158 : vector<16x128xf32>
    %160 = math.tanh %154 : vector<16x128xf32>
    %161 = vector.extract_strided_slice %159 {offsets = [0, 0], sizes = [16, 32], strides = [1, 1]} : vector<16x128xf32> to vector<16x32xf32>
    %162 = vector.extract_strided_slice %159 {offsets = [0, 32], sizes = [16, 32], strides = [1, 1]} : vector<16x128xf32> to vector<16x32xf32>
    %163 = vector.extract_strided_slice %160 {offsets = [0, 64], sizes = [16, 32], strides = [1, 1]} : vector<16x128xf32> to vector<16x32xf32>
    %164 = vector.extract_strided_slice %159 {offsets = [0, 96], sizes = [16, 32], strides = [1, 1]} : vector<16x128xf32> to vector<16x32xf32>
    %165 = arith.mulf %162, %148 : vector<16x32xf32>
    %166 = arith.mulf %161, %163 : vector<16x32xf32>
    %167 = arith.addf %165, %166 : vector<16x32xf32>
    %168 = math.tanh %167 : vector<16x32xf32>
    %169 = arith.mulf %164, %168 : vector<16x32xf32>
    %c0_46 = arith.constant 0 : index
    %c0_47 = arith.constant 0 : index
    %170 = vector.load %arg7[%c0_46, %c0_47] : memref<16x32xf32, #tpu.memory_space<vmem>>, vector<16x32xf32>
    tpu.vector_store %arg7[%c0_46, %c0_47], %169 {strides = array<i32>} : memref<16x32xf32, #tpu.memory_space<vmem>>, vector<16x32xf32>,
    return
  }
  func.func @transform_0(%arg0: i32) -> (i32, i32) {
    %c0_i32 = arith.constant 0 : i32
    %c0_i32_0 = arith.constant 0 : i32
    %c0_i32_1 = arith.constant 0 : i32
    return %c0_i32, %c0_i32_0 : i32, i32
  }
  func.func @transform_1(%arg0: i32) -> (i32, i32) {
    %c0_i32 = arith.constant 0 : i32
    %c0_i32_0 = arith.constant 0 : i32
    %c0_i32_1 = arith.constant 0 : i32
    return %c0_i32, %c0_i32_0 : i32, i32
  }
  func.func @transform_2(%arg0: i32) -> (i32, i32) {
    %c0_i32 = arith.constant 0 : i32
    %c0_i32_0 = arith.constant 0 : i32
    %c0_i32_1 = arith.constant 0 : i32
    return %c0_i32, %c0_i32_0 : i32, i32
  }
  func.func @transform_3(%arg0: i32) -> (i32, i32) {
    %c0_i32 = arith.constant 0 : i32
    %c0_i32_0 = arith.constant 0 : i32
    %c0_i32_1 = arith.constant 0 : i32
    return %c0_i32, %c0_i32_0 : i32, i32
  }
  func.func @transform_4(%arg0: i32) -> (i32, i32) {
    %c0_i32 = arith.constant 0 : i32
    %c0_i32_0 = arith.constant 0 : i32
    %c0_i32_1 = arith.constant 0 : i32
    return %c0_i32, %c0_i32_0 : i32, i32
  }
  func.func @transform_5(%arg0: i32) -> (i32, i32) {
    %c0_i32 = arith.constant 0 : i32
    %c0_i32_0 = arith.constant 0 : i32
    %c0_i32_1 = arith.constant 0 : i32
    return %c0_i32, %c0_i32_0 : i32, i32
  }
  func.func @transform_6(%arg0: i32) -> (i32, i32) {
    %c0_i32 = arith.constant 0 : i32
    %c0_i32_0 = arith.constant 0 : i32
    %c0_i32_1 = arith.constant 0 : i32
    return %c0_i32, %c0_i32_0 : i32, i32
  }
}

</mosaic_0001>

<llo_original>
// kernel: tpu_custom_call.1
$region0: #{tpu_custom_call.1}
  #allocation0 [shape = 'u32[]', space=smem, size = 0x4, offset = 0x4, fixed_abs, tag = 'smem constant byte address 0x4 - core index']
  #allocation1 [shape = 'u32[144,128]{1,0:T(1,128)}', space=vmem, size = 0x12000, scoped, tag = 'internal scratch']
  %s0 = inlined_call_operand.vmem [shape: f32[128,2], index: 0, kind: input, shape index: {}]
  %s1 = inlined_call_operand.vmem [shape: f32[2,32], index: 1, kind: input, shape index: {}]
  %s2 = inlined_call_operand.vmem [shape: f32[1,32], index: 2, kind: input, shape index: {}]
  %s3 = inlined_call_operand.vmem [shape: f32[32,128], index: 3, kind: input, shape index: {}]
  %s4 = inlined_call_operand.vmem [shape: f32[32,128], index: 4, kind: input, shape index: {}]
  %s5 = inlined_call_operand.vmem [shape: f32[1,128], index: 5, kind: input, shape index: {}]
  %s6 = inlined_call_operand.hbm [shape: f32[16,32], index: 6, kind: output, shape index: {}]
  %s7 = sld [smem:[#allocation0]]
  $region34: #{tpu_custom_call.1} parent=0
    _
  %s9 = ssub.s32 1, %s7
  %s10 = scalar_select 0, %s9, %s7
  $region1: #{tpu_custom_call.1} parent=0
    #allocation2 [shape = 'u8[8192]{0}', space=vmem, size = 0x2000, scoped, tag = 'output window, operand 0, single buffered']
    #allocation3 [shape = 's32[1]{0}', space=sflag, size = 0x4, scoped, tag = 'scoped memory for tpu_custom_call.1']
    %11 = vsyncpa [#allocation3], 0
    // Predicated region
    $region2: #{tpu_custom_call.1} parent=1 // pred_check
      _
    $region3: #{tpu_custom_call.1} parent=1 // pred_check_branch
      %13 = sbr.rel (0) target = $region5
    $region4: #{tpu_custom_call.1} parent=1 // pred_region
      _
    $region5: #{tpu_custom_call.1} parent=1 // pred_fallthru
      _
    // Predicated region
    $region6: #{tpu_custom_call.1} parent=1 // pred_check
      _
    $region7: #{tpu_custom_call.1} parent=1 // pred_check_branch
      %15 = sbr.rel (0) target = $region9
    $region8: #{tpu_custom_call.1} parent=1 // pred_region
      _
    $region9: #{tpu_custom_call.1} parent=1 // pred_fallthru
      _
    // Predicated region
    $region10: #{tpu_custom_call.1} parent=1 // pred_check
      _
    $region11: #{tpu_custom_call.1} parent=1 // pred_check_branch
      %17 = sbr.rel (0) target = $region13
    $region12: #{tpu_custom_call.1} parent=1 // pred_region
      _
    $region13: #{tpu_custom_call.1} parent=1 // pred_fallthru
      _
    // Predicated region
    $region14: #{tpu_custom_call.1} parent=1 // pred_check
      _
    $region15: #{tpu_custom_call.1} parent=1 // pred_check_branch
      %19 = sbr.rel (0) target = $region17
    $region16: #{tpu_custom_call.1} parent=1 // pred_region
      _
    $region17: #{tpu_custom_call.1} parent=1 // pred_fallthru
      _
    // Predicated region
    $region18: #{tpu_custom_call.1} parent=1 // pred_check
      _
    $region19: #{tpu_custom_call.1} parent=1 // pred_check_branch
      %21 = sbr.rel (0) target = $region21
    $region20: #{tpu_custom_call.1} parent=1 // pred_region
      _
    $region21: #{tpu_custom_call.1} parent=1 // pred_fallthru
      _
    // Predicated region
    $region22: #{tpu_custom_call.1} parent=1 // pred_check
      _
    $region23: #{tpu_custom_call.1} parent=1 // pred_check_branch
      %23 = sbr.rel (0) target = $region25
    $region24: #{tpu_custom_call.1} parent=1 // pred_region
      _
    $region25: #{tpu_custom_call.1} parent=1 // pred_fallthru
      _
    %v24 = vld [vmem:[%s0] sm:$0xff]
    %v25 = vld [vmem:[%s0 + $0x8] sm:$0xff]
    %v26 = vld [vmem:[%s0 + $0x10] sm:$0xff]
    %v27 = vld [vmem:[%s0 + $0x18] sm:$0xff]
    %v28 = vld [vmem:[%s0 + $0x20] sm:$0xff]
    %v29 = vld [vmem:[%s0 + $0x28] sm:$0xff]
    %v30 = vld [vmem:[%s0 + $0x30] sm:$0xff]
    %v31 = vld [vmem:[%s0 + $0x38] sm:$0xff]
    %v32 = vld [vmem:[%s0 + $0x40] sm:$0xff]
    %v33 = vld [vmem:[%s0 + $0x48] sm:$0xff]
    %v34 = vld [vmem:[%s0 + $0x50] sm:$0xff]
    %v35 = vld [vmem:[%s0 + $0x58] sm:$0xff]
    %v36 = vld [vmem:[%s0 + $0x60] sm:$0xff]
    %v37 = vld [vmem:[%s0 + $0x68] sm:$0xff]
    %v38 = vld [vmem:[%s0 + $0x70] sm:$0xff]
    %v39 = vld [vmem:[%s0 + $0x78] sm:$0xff]
    %v40 = vld [vmem:[%s1] sm:$0x3]
    %v41 = vld [vmem:[%s2] sm:$0x1]
    %v43 = vlaneseq
    %v44 = vshrl.u32 %v43, 7
    %v45 = vsub.s32 0, %v44
    %v46 = vrot.slane %v41, %v45
    %vm48 = vcmask 15360
    %v50 = vsel %vm48, %v24, 0
    %v53 = vsel %vm48, %v25, 0
    %v56 = vsel %vm48, %v26, 0
    %v59 = vsel %vm48, %v27, 0
    %v62 = vsel %vm48, %v28, 0
    %v65 = vsel %vm48, %v29, 0
    %v68 = vsel %vm48, %v30, 0
    %v71 = vsel %vm48, %v31, 0
    %v74 = vsel %vm48, %v32, 0
    %v77 = vsel %vm48, %v33, 0
    %v80 = vsel %vm48, %v34, 0
    %v83 = vsel %vm48, %v35, 0
    %v86 = vsel %vm48, %v36, 0
    %v89 = vsel %vm48, %v37, 0
    %v92 = vsel %vm48, %v38, 0
    %v95 = vsel %vm48, %v39, 0
    %vm97 = vcmask 1041408
    %v99 = vsel %vm97, %v40, 0
    %101 = vmatprep.subr.mxu0 0.0
    %102 = vmatpush1.msra.mxu0 %v99
    %103 = vmatprep.subr.mxu0 0.0
    %104 = vmatpush1.msra.mxu0 0.0
    %105 = vmatprep.subr.mxu0 0.0
    %106 = vmatpush1.msra.mxu0 0.0
    %107 = vmatprep.subr.mxu0 0.0
    %108 = vmatpush1.msra.mxu0 0.0
    %109 = vmatprep.subr.mxu0 0.0
    %110 = vmatpush1.msra.mxu0 0.0
    %111 = vmatprep.subr.mxu0 0.0
    %112 = vmatpush1.msra.mxu0 0.0
    %113 = vmatprep.subr.mxu0 0.0
    %114 = vmatpush1.msra.mxu0 0.0
    %115 = vmatprep.subr.mxu0 0.0
    %116 = vmatpush1.msra.mxu0 0.0
    %117 = vmatprep.subr.mxu0 0.0
    %118 = vmatpush1.msra.mxu0 0.0
    %119 = vmatprep.subr.mxu0 0.0
    %120 = vmatpush1.msra.mxu0 0.0
    %121 = vmatprep.subr.mxu0 0.0
    %122 = vmatpush1.msra.mxu0 0.0
    %123 = vmatprep.subr.mxu0 0.0
    %124 = vmatpush1.msra.mxu0 0.0
    %125 = vmatprep.subr.mxu0 0.0
    %126 = vmatpush1.msra.mxu0 0.0
    %127 = vmatprep.subr.mxu0 0.0
    %128 = vmatpush1.msra.mxu0 0.0
    %129 = vmatprep.subr.mxu0 0.0
    %130 = vmatpush1.msra.mxu0 0.0
    %131 = vmatprep.subr.mxu0 0.0
    %132 = vmatpush1.msra.mxu0 0.0
    %133 = vmatprep.subr.mxu0 0.0
    %134 = vmatpush1.msra.mxu0 0.0
    %135 = vmatprep.subr.mxu0 0.0
    %136 = vmatpush1.msra.mxu0 0.0
    %137 = vmatprep.subr.mxu0 0.0
    %138 = vmatpush1.msra.mxu0 0.0
    %139 = vmatprep.subr.mxu0 0.0
    %140 = vmatpush1.msra.mxu0 0.0
    %141 = vmatprep.subr.mxu0 0.0
    %142 = vmatpush1.msra.mxu0 0.0
    %143 = vmatprep.subr.mxu0 0.0
    %144 = vmatpush1.msra.mxu0 0.0
    %145 = vmatprep.subr.mxu0 0.0
    %146 = vmatpush1.msra.mxu0 0.0
    %147 = vmatprep.subr.mxu0 0.0
    %148 = vmatpush1.msra.mxu0 0.0
    %149 = vmatprep.subr.mxu0 0.0
    %150 = vmatpush1.msra.mxu0 0.0
    %151 = vmatprep.subr.mxu0 0.0
    %152 = vmatpush1.msra.mxu0 0.0
    %153 = vmatprep.subr.mxu0 0.0
    %154 = vmatpush1.msra.mxu0 0.0
    %155 = vmatprep.subr.mxu0 0.0
    %156 = vmatpush1.msra.mxu0 0.0
    %157 = vmatprep.subr.mxu0 0.0
    %158 = vmatpush1.msra.mxu0 0.0
    %159 = vmatprep.subr.mxu0 0.0
    %160 = vmatpush1.msra.mxu0 0.0
    %161 = vmatprep.subr.mxu0 0.0
    %162 = vmatpush1.msra.mxu0 0.0
    %163 = vmatprep.subr.mxu0 0.0
    %164 = vmatpush1.msra.mxu0 0.0
    %165 = vmatprep.mubr.f32.mxu0 0.0
    %166 = vmatmul.mubr.f32.gmra.mrb[0].mxu0 %v50
    %v167 = vpop.f32.mrb[0].mxu0
    %v168 = vadd.f32 %v46, %v167
    %v169 = vpop.f32.mrb[0].mxu0
    %170 = vmatprep.mubr.f32.mxu0 0.0
    %171 = vmatmul.mubr.f32.gmra.mrb[0].mxu0 %v53
    %v172 = vpop.f32.mrb[0].mxu0
    %v173 = vadd.f32 %v46, %v172
    %v174 = vpop.f32.mrb[0].mxu0
    %175 = vmatprep.mubr.f32.mxu0 0.0
    %176 = vmatmul.mubr.f32.gmra.mrb[0].mxu0 %v56
    %v177 = vpop.f32.mrb[0].mxu0
    %v178 = vadd.f32 %v46, %v177
    %v179 = vpop.f32.mrb[0].mxu0
    %180 = vmatprep.mubr.f32.mxu0 0.0
    %181 = vmatmul.mubr.f32.gmra.mrb[0].mxu0 %v59
    %v182 = vpop.f32.mrb[0].mxu0
    %v183 = vadd.f32 %v46, %v182
    %v184 = vpop.f32.mrb[0].mxu0
    %185 = vmatprep.mubr.f32.mxu0 0.0
    %186 = vmatmul.mubr.f32.gmra.mrb[0].mxu0 %v62
    %v187 = vpop.f32.mrb[0].mxu0
    %v188 = vadd.f32 %v46, %v187
    %v189 = vpop.f32.mrb[0].mxu0
    %190 = vmatprep.mubr.f32.mxu0 0.0
    %191 = vmatmul.mubr.f32.gmra.mrb[0].mxu0 %v65
    %v192 = vpop.f32.mrb[0].mxu0
    %v193 = vadd.f32 %v46, %v192
    %v194 = vpop.f32.mrb[0].mxu0
    %195 = vmatprep.mubr.f32.mxu0 0.0
    %196 = vmatmul.mubr.f32.gmra.mrb[0].mxu0 %v68
    %v197 = vpop.f32.mrb[0].mxu0
    %v198 = vadd.f32 %v46, %v197
    %v199 = vpop.f32.mrb[0].mxu0
    %200 = vmatprep.mubr.f32.mxu0 0.0
    %201 = vmatmul.mubr.f32.gmra.mrb[0].mxu0 %v71
    %v202 = vpop.f32.mrb[0].mxu0
    %v203 = vadd.f32 %v46, %v202
    %v204 = vpop.f32.mrb[0].mxu0
    %205 = vmatprep.mubr.f32.mxu0 0.0
    %206 = vmatmul.mubr.f32.gmra.mrb[0].mxu0 %v74
    %v207 = vpop.f32.mrb[0].mxu0
    %v208 = vadd.f32 %v46, %v207
    %v209 = vpop.f32.mrb[0].mxu0
    %210 = vmatprep.mubr.f32.mxu0 0.0
    %211 = vmatmul.mubr.f32.gmra.mrb[0].mxu0 %v77
    %v212 = vpop.f32.mrb[0].mxu0
    %v213 = vadd.f32 %v46, %v212
    %v214 = vpop.f32.mrb[0].mxu0
    %215 = vmatprep.mubr.f32.mxu0 0.0
    %216 = vmatmul.mubr.f32.gmra.mrb[0].mxu0 %v80
    %v217 = vpop.f32.mrb[0].mxu0
    %v218 = vadd.f32 %v46, %v217
    %v219 = vpop.f32.mrb[0].mxu0
    %220 = vmatprep.mubr.f32.mxu0 0.0
    %221 = vmatmul.mubr.f32.gmra.mrb[0].mxu0 %v83
    %v222 = vpop.f32.mrb[0].mxu0
    %v223 = vadd.f32 %v46, %v222
    %v224 = vpop.f32.mrb[0].mxu0
    %225 = vmatprep.mubr.f32.mxu0 0.0
    %226 = vmatmul.mubr.f32.gmra.mrb[0].mxu0 %v86
    %v227 = vpop.f32.mrb[0].mxu0
    %v228 = vadd.f32 %v46, %v227
    %v229 = vpop.f32.mrb[0].mxu0
    %230 = vmatprep.mubr.f32.mxu0 0.0
    %231 = vmatmul.mubr.f32.gmra.mrb[0].mxu0 %v89
    %v232 = vpop.f32.mrb[0].mxu0
    %v233 = vadd.f32 %v46, %v232
    %v234 = vpop.f32.mrb[0].mxu0
    %235 = vmatprep.mubr.f32.mxu0 0.0
    %236 = vmatmul.mubr.f32.gmra.mrb[0].mxu0 %v92
    %v237 = vpop.f32.mrb[0].mxu0
    %v238 = vadd.f32 %v46, %v237
    %v239 = vpop.f32.mrb[0].mxu0
    %240 = vmatprep.mubr.f32.mxu0 0.0
    %241 = vmatmul.mubr.f32.gmra.mrb[0].mxu0 %v95
    %v242 = vpop.f32.mrb[0].mxu0
    %v243 = vadd.f32 %v46, %v242
    %v244 = vpop.f32.mrb[0].mxu0
    %245 = vdwg.mxu0
    %vm246 = vcmp.gt.f32.partialorder %v168, 0.0
    %vm247 = vcmp.gt.f32.partialorder %v173, 0.0
    %vm248 = vcmp.gt.f32.partialorder %v178, 0.0
    %vm249 = vcmp.gt.f32.partialorder %v183, 0.0
    %vm250 = vcmp.gt.f32.partialorder %v188, 0.0
    %vm251 = vcmp.gt.f32.partialorder %v193, 0.0
    %vm252 = vcmp.gt.f32.partialorder %v198, 0.0
    %vm253 = vcmp.gt.f32.partialorder %v203, 0.0
    %vm254 = vcmp.gt.f32.partialorder %v208, 0.0
    %vm255 = vcmp.gt.f32.partialorder %v213, 0.0
    %vm256 = vcmp.gt.f32.partialorder %v218, 0.0
    %vm257 = vcmp.gt.f32.partialorder %v223, 0.0
    %vm258 = vcmp.gt.f32.partialorder %v228, 0.0
    %vm259 = vcmp.gt.f32.partialorder %v233, 0.0
    %vm260 = vcmp.gt.f32.partialorder %v238, 0.0
    %vm261 = vcmp.gt.f32.partialorder %v243, 0.0
    %v262 = vmul.f32 %v168, 0.1
    %v263 = vmul.f32 %v173, 0.1
    %v264 = vmul.f32 %v178, 0.1
    %v265 = vmul.f32 %v183, 0.1
    %v266 = vmul.f32 %v188, 0.1
    %v267 = vmul.f32 %v193, 0.1
    %v268 = vmul.f32 %v198, 0.1
    %v269 = vmul.f32 %v203, 0.1
    %v270 = vmul.f32 %v208, 0.1
    %v271 = vmul.f32 %v213, 0.1
    %v272 = vmul.f32 %v218, 0.1
    %v273 = vmul.f32 %v223, 0.1
    %v274 = vmul.f32 %v228, 0.1
    %v275 = vmul.f32 %v233, 0.1
    %v276 = vmul.f32 %v238, 0.1
    %v277 = vmul.f32 %v243, 0.1
    %v278 = vsel %vm246, %v168, %v262
    %v279 = vsel %vm247, %v173, %v263
    %v280 = vsel %vm248, %v178, %v264
    %v281 = vsel %vm249, %v183, %v265
    %v282 = vsel %vm250, %v188, %v266
    %v283 = vsel %vm251, %v193, %v267
    %v284 = vsel %vm252, %v198, %v268
    %v285 = vsel %vm253, %v203, %v269
    %v286 = vsel %vm254, %v208, %v270
    %v287 = vsel %vm255, %v213, %v271
    %v288 = vsel %vm256, %v218, %v272
    %v289 = vsel %vm257, %v223, %v273
    %v290 = vsel %vm258, %v228, %v274
    %v291 = vsel %vm259, %v233, %v275
    %v292 = vsel %vm260, %v238, %v276
    %v293 = vsel %vm261, %v243, %v277
    %v294 = vld [vmem:[%s3] sm:$0xff]
    %v295 = vld [vmem:[%s3 + $0x8] sm:$0xff]
    %v296 = vld [vmem:[%s3 + $0x10] sm:$0xff]
    %v297 = vld [vmem:[%s3 + $0x18] sm:$0xff]
    %v298 = vld [vmem:[%s5] sm:$0x1]
    %v300 = vlaneseq
    %v301 = vshrl.u32 %v300, 7
    %v302 = vsub.s32 0, %v301
    %v303 = vrot.slane %v298, %v302
    %vm305 = vcmask 261120
    %v307 = vsel %vm305, %v278, 0
    %v310 = vsel %vm305, %v279, 0
    %v313 = vsel %vm305, %v280, 0
    %v316 = vsel %vm305, %v281, 0
    %v319 = vsel %vm305, %v282, 0
    %v322 = vsel %vm305, %v283, 0
    %v325 = vsel %vm305, %v284, 0
    %v328 = vsel %vm305, %v285, 0
    %v331 = vsel %vm305, %v286, 0
    %v334 = vsel %vm305, %v287, 0
    %v337 = vsel %vm305, %v288, 0
    %v340 = vsel %vm305, %v289, 0
    %v343 = vsel %vm305, %v290, 0
    %v346 = vsel %vm305, %v291, 0
    %v349 = vsel %vm305, %v292, 0
    %v352 = vsel %vm305, %v293, 0
    %354 = vmatprep.subr.mxu0 0.0
    %355 = vmatpush1.msra.mxu0 %v294
    %356 = vmatprep.subr.mxu0 0.0
    %357 = vmatpush1.msra.mxu0 %v295
    %358 = vmatprep.subr.mxu0 0.0
    %359 = vmatpush1.msra.mxu0 %v296
    %360 = vmatprep.subr.mxu0 0.0
    %361 = vmatpush1.msra.mxu0 %v297
    %362 = vmatprep.subr.mxu0 0.0
    %363 = vmatpush1.msra.mxu0 0.0
    %364 = vmatprep.subr.mxu0 0.0
    %365 = vmatpush1.msra.mxu0 0.0
    %366 = vmatprep.subr.mxu0 0.0
    %367 = vmatpush1.msra.mxu0 0.0
    %368 = vmatprep.subr.mxu0 0.0
    %369 = vmatpush1.msra.mxu0 0.0
    %370 = vmatprep.subr.mxu0 0.0
    %371 = vmatpush1.msra.mxu0 0.0
    %372 = vmatprep.subr.mxu0 0.0
    %373 = vmatpush1.msra.mxu0 0.0
    %374 = vmatprep.subr.mxu0 0.0
    %375 = vmatpush1.msra.mxu0 0.0
    %376 = vmatprep.subr.mxu0 0.0
    %377 = vmatpush1.msra.mxu0 0.0
    %378 = vmatprep.subr.mxu0 0.0
    %379 = vmatpush1.msra.mxu0 0.0
    %380 = vmatprep.subr.mxu0 0.0
    %381 = vmatpush1.msra.mxu0 0.0
    %382 = vmatprep.subr.mxu0 0.0
    %383 = vmatpush1.msra.mxu0 0.0
    %384 = vmatprep.subr.mxu0 0.0
    %385 = vmatpush1.msra.mxu0 0.0
    %386 = vmatprep.subr.mxu0 0.0
    %387 = vmatpush1.msra.mxu0 0.0
    %388 = vmatprep.subr.mxu0 0.0
    %389 = vmatpush1.msra.mxu0 0.0
    %390 = vmatprep.subr.mxu0 0.0
    %391 = vmatpush1.msra.mxu0 0.0
    %392 = vmatprep.subr.mxu0 0.0
    %393 = vmatpush1.msra.mxu0 0.0
    %394 = vmatprep.subr.mxu0 0.0
    %395 = vmatpush1.msra.mxu0 0.0
    %396 = vmatprep.subr.mxu0 0.0
    %397 = vmatpush1.msra.mxu0 0.0
    %398 = vmatprep.subr.mxu0 0.0
    %399 = vmatpush1.msra.mxu0 0.0
    %400 = vmatprep.subr.mxu0 0.0
    %401 = vmatpush1.msra.mxu0 0.0
    %402 = vmatprep.subr.mxu0 0.0
    %403 = vmatpush1.msra.mxu0 0.0
    %404 = vmatprep.subr.mxu0 0.0
    %405 = vmatpush1.msra.mxu0 0.0
    %406 = vmatprep.subr.mxu0 0.0
    %407 = vmatpush1.msra.mxu0 0.0
    %408 = vmatprep.subr.mxu0 0.0
    %409 = vmatpush1.msra.mxu0 0.0
    %410 = vmatprep.subr.mxu0 0.0
    %411 = vmatpush1.msra.mxu0 0.0
    %412 = vmatprep.subr.mxu0 0.0
    %413 = vmatpush1.msra.mxu0 0.0
    %414 = vmatprep.subr.mxu0 0.0
    %415 = vmatpush1.msra.mxu0 0.0
    %416 = vmatprep.subr.mxu0 0.0
    %417 = vmatpush1.msra.mxu0 0.0
    %418 = vmatprep.mubr.f32.mxu0 0.0
    %419 = vmatmul.mubr.f32.gmra.mrb[0].mxu0 %v307
    %v420 = vpop.f32.mrb[0].mxu0
    %v421 = vadd.f32 %v303, %v420
    %v422 = vpop.f32.mrb[0].mxu0
    %423 = vmatprep.mubr.f32.mxu0 0.0
    %424 = vmatmul.mubr.f32.gmra.mrb[0].mxu0 %v310
    %v425 = vpop.f32.mrb[0].mxu0
    %v426 = vadd.f32 %v303, %v425
    %v427 = vpop.f32.mrb[0].mxu0
    %428 = vmatprep.mubr.f32.mxu0 0.0
    %429 = vmatmul.mubr.f32.gmra.mrb[0].mxu0 %v313
    %v430 = vpop.f32.mrb[0].mxu0
    %v431 = vadd.f32 %v303, %v430
    %v432 = vpop.f32.mrb[0].mxu0
    %433 = vmatprep.mubr.f32.mxu0 0.0
    %434 = vmatmul.mubr.f32.gmra.mrb[0].mxu0 %v316
    %v435 = vpop.f32.mrb[0].mxu0
    %v436 = vadd.f32 %v303, %v435
    %v437 = vpop.f32.mrb[0].mxu0
    %438 = vmatprep.mubr.f32.mxu0 0.0
    %439 = vmatmul.mubr.f32.gmra.mrb[0].mxu0 %v319
    %v440 = vpop.f32.mrb[0].mxu0
    %v441 = vadd.f32 %v303, %v440
    %v442 = vpop.f32.mrb[0].mxu0
    %443 = vmatprep.mubr.f32.mxu0 0.0
    %444 = vmatmul.mubr.f32.gmra.mrb[0].mxu0 %v322
    %v445 = vpop.f32.mrb[0].mxu0
    %v446 = vadd.f32 %v303, %v445
    %v447 = vpop.f32.mrb[0].mxu0
    %448 = vmatprep.mubr.f32.mxu0 0.0
    %449 = vmatmul.mubr.f32.gmra.mrb[0].mxu0 %v325
    %v450 = vpop.f32.mrb[0].mxu0
    %v451 = vadd.f32 %v303, %v450
    %v452 = vpop.f32.mrb[0].mxu0
    %453 = vmatprep.mubr.f32.mxu0 0.0
    %454 = vmatmul.mubr.f32.gmra.mrb[0].mxu0 %v328
    %v455 = vpop.f32.mrb[0].mxu0
    %v456 = vadd.f32 %v303, %v455
    %v457 = vpop.f32.mrb[0].mxu0
    %458 = vmatprep.mubr.f32.mxu0 0.0
    %459 = vmatmul.mubr.f32.gmra.mrb[0].mxu0 %v331
    %v460 = vpop.f32.mrb[0].mxu0
    %v461 = vadd.f32 %v303, %v460
    %v462 = vpop.f32.mrb[0].mxu0
    %463 = vmatprep.mubr.f32.mxu0 0.0
    %464 = vmatmul.mubr.f32.gmra.mrb[0].mxu0 %v334
    %v465 = vpop.f32.mrb[0].mxu0
    %v466 = vadd.f32 %v303, %v465
    %v467 = vpop.f32.mrb[0].mxu0
    %468 = vmatprep.mubr.f32.mxu0 0.0
    %469 = vmatmul.mubr.f32.gmra.mrb[0].mxu0 %v337
    %v470 = vpop.f32.mrb[0].mxu0
    %v471 = vadd.f32 %v303, %v470
    %v472 = vpop.f32.mrb[0].mxu0
    %473 = vmatprep.mubr.f32.mxu0 0.0
    %474 = vmatmul.mubr.f32.gmra.mrb[0].mxu0 %v340
    %v475 = vpop.f32.mrb[0].mxu0
    %v476 = vadd.f32 %v303, %v475
    %v477 = vpop.f32.mrb[0].mxu0
    %478 = vmatprep.mubr.f32.mxu0 0.0
    %479 = vmatmul.mubr.f32.gmra.mrb[0].mxu0 %v343
    %v480 = vpop.f32.mrb[0].mxu0
    %v481 = vadd.f32 %v303, %v480
    %v482 = vpop.f32.mrb[0].mxu0
    %483 = vmatprep.mubr.f32.mxu0 0.0
    %484 = vmatmul.mubr.f32.gmra.mrb[0].mxu0 %v346
    %v485 = vpop.f32.mrb[0].mxu0
    %v486 = vadd.f32 %v303, %v485
    %v487 = vpop.f32.mrb[0].mxu0
    %488 = vmatprep.mubr.f32.mxu0 0.0
    %489 = vmatmul.mubr.f32.gmra.mrb[0].mxu0 %v349
    %v490 = vpop.f32.mrb[0].mxu0
    %v491 = vadd.f32 %v303, %v490
    %v492 = vpop.f32.mrb[0].mxu0
    %493 = vmatprep.mubr.f32.mxu0 0.0
    %494 = vmatmul.mubr.f32.gmra.mrb[0].mxu0 %v352
    %v495 = vpop.f32.mrb[0].mxu0
    %v496 = vadd.f32 %v303, %v495
    %v497 = vpop.f32.mrb[0].mxu0
    %498 = vdwg.mxu0
    %v499 = vld [vmem:[%s4] sm:$0xff]
    %v500 = vld [vmem:[%s4 + $0x8] sm:$0xff]
    %v501 = vld [vmem:[%s4 + $0x10] sm:$0xff]
    %v502 = vld [vmem:[%s4 + $0x18] sm:$0xff]
    %v504 = vsel %vm305, 0.0, 0
    %506 = vmatprep.subr.mxu0 0.0
    %507 = vmatpush1.msra.mxu0 %v499
    %508 = vmatprep.subr.mxu0 0.0
    %509 = vmatpush1.msra.mxu0 %v500
    %510 = vmatprep.subr.mxu0 0.0
    %511 = vmatpush1.msra.mxu0 %v501
    %512 = vmatprep.subr.mxu0 0.0
    %513 = vmatpush1.msra.mxu0 %v502
    %514 = vmatprep.subr.mxu0 0.0
    %515 = vmatpush1.msra.mxu0 0.0
    %516 = vmatprep.subr.mxu0 0.0
    %517 = vmatpush1.msra.mxu0 0.0
    %518 = vmatprep.subr.mxu0 0.0
    %519 = vmatpush1.msra.mxu0 0.0
    %520 = vmatprep.subr.mxu0 0.0
    %521 = vmatpush1.msra.mxu0 0.0
    %522 = vmatprep.subr.mxu0 0.0
    %523 = vmatpush1.msra.mxu0 0.0
    %524 = vmatprep.subr.mxu0 0.0
    %525 = vmatpush1.msra.mxu0 0.0
    %526 = vmatprep.subr.mxu0 0.0
    %527 = vmatpush1.msra.mxu0 0.0
    %528 = vmatprep.subr.mxu0 0.0
    %529 = vmatpush1.msra.mxu0 0.0
    %530 = vmatprep.subr.mxu0 0.0
    %531 = vmatpush1.msra.mxu0 0.0
    %532 = vmatprep.subr.mxu0 0.0
    %533 = vmatpush1.msra.mxu0 0.0
    %534 = vmatprep.subr.mxu0 0.0
    %535 = vmatpush1.msra.mxu0 0.0
    %536 = vmatprep.subr.mxu0 0.0
    %537 = vmatpush1.msra.mxu0 0.0
    %538 = vmatprep.subr.mxu0 0.0
    %539 = vmatpush1.msra.mxu0 0.0
    %540 = vmatprep.subr.mxu0 0.0
    %541 = vmatpush1.msra.mxu0 0.0
    %542 = vmatprep.subr.mxu0 0.0
    %543 = vmatpush1.msra.mxu0 0.0
    %544 = vmatprep.subr.mxu0 0.0
    %545 = vmatpush1.msra.mxu0 0.0
    %546 = vmatprep.subr.mxu0 0.0
    %547 = vmatpush1.msra.mxu0 0.0
    %548 = vmatprep.subr.mxu0 0.0
    %549 = vmatpush1.msra.mxu0 0.0
    %550 = vmatprep.subr.mxu0 0.0
    %551 = vmatpush1.msra.mxu0 0.0
    %552 = vmatprep.subr.mxu0 0.0
    %553 = vmatpush1.msra.mxu0 0.0
    %554 = vmatprep.subr.mxu0 0.0
    %555 = vmatpush1.msra.mxu0 0.0
    %556 = vmatprep.subr.mxu0 0.0
    %557 = vmatpush1.msra.mxu0 0.0
    %558 = vmatprep.subr.mxu0 0.0
    %559 = vmatpush1.msra.mxu0 0.0
    %560 = vmatprep.subr.mxu0 0.0
    %561 = vmatpush1.msra.mxu0 0.0
    %562 = vmatprep.subr.mxu0 0.0
    %563 = vmatpush1.msra.mxu0 0.0
    %564 = vmatprep.subr.mxu0 0.0
    %565 = vmatpush1.msra.mxu0 0.0
    %566 = vmatprep.subr.mxu0 0.0
    %567 = vmatpush1.msra.mxu0 0.0
    %568 = vmatprep.subr.mxu0 0.0
    %569 = vmatpush1.msra.mxu0 0.0
    %570 = vmatprep.mubr.f32.mxu0 0.0
    %571 = vmatmul.mubr.f32.gmra.mrb[0].mxu0 %v504
    %v572 = vpop.f32.mrb[0].mxu0
    %v573 = vadd.f32 0.0, %v572
    %v574 = vpop.f32.mrb[0].mxu0
    %575 = vmatprep.mubr.f32.mxu0 0.0
    %576 = vmatmul.mubr.f32.gmra.mrb[0].mxu0 %v504
    %v577 = vpop.f32.mrb[0].mxu0
    %v578 = vadd.f32 0.0, %v577
    %v579 = vpop.f32.mrb[0].mxu0
    %580 = vdwg.mxu0
    %v581 = vadd.f32 %v421, %v573
    %v582 = vadd.f32 %v426, %v578
    %v583 = vxor.u32 %v581, 2147483648
    %v584 = vxor.u32 %v582, 2147483648
    %v585 = vmul.f32 %v583, 1.442695
    %v586 = vpow.pop %v585
    %v587 = vmul.f32 %v584, 1.442695
    %v588 = vpow.pop %v587
    %v589 = vadd.f32 %v586, 1.0
    %v590 = vadd.f32 %v588, 1.0
    %v591 = vrcp.pop %v589
    %v592 = vmul.f32 1.0, %v591
    %v593 = vrcp.pop %v590
    %v594 = vmul.f32 1.0, %v593
    %v595 = vtanh.pop %v581
    %v596 = vtanh.pop %v582
    %v597 = vmul.f32 %v592, 0.0
    %v598 = vmul.f32 %v594, 0.0
    %601 = vrot.lane.b32.xlu0 %v595, 64
    %v602 = vpop.permute.xlu0 %601
    %603 = vrot.lane.b32.xlu0 %v596, 64
    %v604 = vpop.permute.xlu0 %603
    %v607 = vmul.f32 %v592, %v602
    %v608 = vmul.f32 %v594, %v604
    %611 = vrot.lane.b32.xlu0 %v607, 32
    %v612 = vpop.permute.xlu0 %611
    %613 = vrot.lane.b32.xlu0 %v608, 32
    %v614 = vpop.permute.xlu0 %613
    %v617 = vadd.f32 %v597, %v612
    %v618 = vadd.f32 %v598, %v614
    %v619 = vtanh.pop %v617
    %v620 = vtanh.pop %v618
    %623 = vrot.lane.b32.xlu0 %v619, 64
    %v624 = vpop.permute.xlu0 %623
    %625 = vrot.lane.b32.xlu0 %v620, 64
    %v626 = vpop.permute.xlu0 %625
    %v629 = vmul.f32 %v592, %v624
    %v630 = vmul.f32 %v594, %v626
    %633 = vrot.lane.b32.xlu0 %v629, 32
    %v634 = vpop.permute.xlu0 %633
    %635 = vrot.lane.b32.xlu0 %v630, 32
    %v636 = vpop.permute.xlu0 %635
    %v637 = vsel %vm305, %v634, 0
    %v639 = vsel %vm305, %v636, 0
    %641 = vmatprep.subr.mxu0 0.0
    %642 = vmatpush1.msra.mxu0 %v499
    %643 = vmatprep.subr.mxu0 0.0
    %644 = vmatpush1.msra.mxu0 %v500
    %645 = vmatprep.subr.mxu0 0.0
    %646 = vmatpush1.msra.mxu0 %v501
    %647 = vmatprep.subr.mxu0 0.0
    %648 = vmatpush1.msra.mxu0 %v502
    %649 = vmatprep.subr.mxu0 0.0
    %650 = vmatpush1.msra.mxu0 0.0
    %651 = vmatprep.subr.mxu0 0.0
    %652 = vmatpush1.msra.mxu0 0.0
    %653 = vmatprep.subr.mxu0 0.0
    %654 = vmatpush1.msra.mxu0 0.0
    %655 = vmatprep.subr.mxu0 0.0
    %656 = vmatpush1.msra.mxu0 0.0
    %657 = vmatprep.subr.mxu0 0.0
    %658 = vmatpush1.msra.mxu0 0.0
    %659 = vmatprep.subr.mxu0 0.0
    %660 = vmatpush1.msra.mxu0 0.0
    %661 = vmatprep.subr.mxu0 0.0
    %662 = vmatpush1.msra.mxu0 0.0
    %663 = vmatprep.subr.mxu0 0.0
    %664 = vmatpush1.msra.mxu0 0.0
    %665 = vmatprep.subr.mxu0 0.0
    %666 = vmatpush1.msra.mxu0 0.0
    %667 = vmatprep.subr.mxu0 0.0
    %668 = vmatpush1.msra.mxu0 0.0
    %669 = vmatprep.subr.mxu0 0.0
    %670 = vmatpush1.msra.mxu0 0.0
    %671 = vmatprep.subr.mxu0 0.0
    %672 = vmatpush1.msra.mxu0 0.0
    %673 = vmatprep.subr.mxu0 0.0
    %674 = vmatpush1.msra.mxu0 0.0
    %675 = vmatprep.subr.mxu0 0.0
    %676 = vmatpush1.msra.mxu0 0.0
    %677 = vmatprep.subr.mxu0 0.0
    %678 = vmatpush1.msra.mxu0 0.0
    %679 = vmatprep.subr.mxu0 0.0
    %680 = vmatpush1.msra.mxu0 0.0
    %681 = vmatprep.subr.mxu0 0.0
    %682 = vmatpush1.msra.mxu0 0.0
    %683 = vmatprep.subr.mxu0 0.0
    %684 = vmatpush1.msra.mxu0 0.0
    %685 = vmatprep.subr.mxu0 0.0
    %686 = vmatpush1.msra.mxu0 0.0
    %687 = vmatprep.subr.mxu0 0.0
    %688 = vmatpush1.msra.mxu0 0.0
    %689 = vmatprep.subr.mxu0 0.0
    %690 = vmatpush1.msra.mxu0 0.0
    %691 = vmatprep.subr.mxu0 0.0
    %692 = vmatpush1.msra.mxu0 0.0
    %693 = vmatprep.subr.mxu0 0.0
    %694 = vmatpush1.msra.mxu0 0.0
    %695 = vmatprep.subr.mxu0 0.0
    %696 = vmatpush1.msra.mxu0 0.0
    %697 = vmatprep.subr.mxu0 0.0
    %698 = vmatpush1.msra.mxu0 0.0
    %699 = vmatprep.subr.mxu0 0.0
    %700 = vmatpush1.msra.mxu0 0.0
    %701 = vmatprep.subr.mxu0 0.0
    %702 = vmatpush1.msra.mxu0 0.0
    %703 = vmatprep.subr.mxu0 0.0
    %704 = vmatpush1.msra.mxu0 0.0
    %705 = vmatprep.mubr.f32.mxu0 0.0
    %706 = vmatmul.mubr.f32.gmra.mrb[0].mxu0 %v637
    %v707 = vpop.f32.mrb[0].mxu0
    %v708 = vadd.f32 0.0, %v707
    %v709 = vpop.f32.mrb[0].mxu0
    %710 = vmatprep.mubr.f32.mxu0 0.0
    %711 = vmatmul.mubr.f32.gmra.mrb[0].mxu0 %v639
    %v712 = vpop.f32.mrb[0].mxu0
    %v713 = vadd.f32 0.0, %v712
    %v714 = vpop.f32.mrb[0].mxu0
    %715 = vdwg.mxu0
    %v716 = vadd.f32 %v431, %v708
    %v717 = vadd.f32 %v436, %v713
    %v718 = vxor.u32 %v716, 2147483648
    %v719 = vxor.u32 %v717, 2147483648
    %v720 = vmul.f32 %v718, 1.442695
    %v721 = vpow.pop %v720
    %v722 = vmul.f32 %v719, 1.442695
    %v723 = vpow.pop %v722
    %v724 = vadd.f32 %v721, 1.0
    %v725 = vadd.f32 %v723, 1.0
    %v726 = vrcp.pop %v724
    %v727 = vmul.f32 1.0, %v726
    %v728 = vrcp.pop %v725
    %v729 = vmul.f32 1.0, %v728
    %v730 = vtanh.pop %v716
    %v731 = vtanh.pop %v717
    %v732 = vmul.f32 %v727, %v617
    %v733 = vmul.f32 %v729, %v618
    %736 = vrot.lane.b32.xlu0 %v730, 64
    %v737 = vpop.permute.xlu0 %736
    %738 = vrot.lane.b32.xlu0 %v731, 64
    %v739 = vpop.permute.xlu0 %738
    %v742 = vmul.f32 %v727, %v737
    %v743 = vmul.f32 %v729, %v739
    %746 = vrot.lane.b32.xlu0 %v742, 32
    %v747 = vpop.permute.xlu0 %746
    %748 = vrot.lane.b32.xlu0 %v743, 32
    %v749 = vpop.permute.xlu0 %748
    %v752 = vadd.f32 %v732, %v747
    %v753 = vadd.f32 %v733, %v749
    %v754 = vtanh.pop %v752
    %v755 = vtanh.pop %v753
    %758 = vrot.lane.b32.xlu0 %v754, 64
    %v759 = vpop.permute.xlu0 %758
    %760 = vrot.lane.b32.xlu0 %v755, 64
    %v761 = vpop.permute.xlu0 %760
    %v764 = vmul.f32 %v727, %v759
    %v765 = vmul.f32 %v729, %v761
    %768 = vrot.lane.b32.xlu0 %v764, 32
    %v769 = vpop.permute.xlu0 %768
    %770 = vrot.lane.b32.xlu0 %v765, 32
    %v771 = vpop.permute.xlu0 %770
    %v772 = vsel %vm305, %v769, 0
    %v774 = vsel %vm305, %v771, 0
    %776 = vmatprep.subr.mxu0 0.0
    %777 = vmatpush1.msra.mxu0 %v499
    %778 = vmatprep.subr.mxu0 0.0
    %779 = vmatpush1.msra.mxu0 %v500
    %780 = vmatprep.subr.mxu0 0.0
    %781 = vmatpush1.msra.mxu0 %v501
    %782 = vmatprep.subr.mxu0 0.0
    %783 = vmatpush1.msra.mxu0 %v502
    %784 = vmatprep.subr.mxu0 0.0
    %785 = vmatpush1.msra.mxu0 0.0
    %786 = vmatprep.subr.mxu0 0.0
    %787 = vmatpush1.msra.mxu0 0.0
    %788 = vmatprep.subr.mxu0 0.0
    %789 = vmatpush1.msra.mxu0 0.0
    %790 = vmatprep.subr.mxu0 0.0
    %791 = vmatpush1.msra.mxu0 0.0
    %792 = vmatprep.subr.mxu0 0.0
    %793 = vmatpush1.msra.mxu0 0.0
    %794 = vmatprep.subr.mxu0 0.0
    %795 = vmatpush1.msra.mxu0 0.0
    %796 = vmatprep.subr.mxu0 0.0
    %797 = vmatpush1.msra.mxu0 0.0
    %798 = vmatprep.subr.mxu0 0.0
    %799 = vmatpush1.msra.mxu0 0.0
    %800 = vmatprep.subr.mxu0 0.0
    %801 = vmatpush1.msra.mxu0 0.0
    %802 = vmatprep.subr.mxu0 0.0
    %803 = vmatpush1.msra.mxu0 0.0
    %804 = vmatprep.subr.mxu0 0.0
    %805 = vmatpush1.msra.mxu0 0.0
    %806 = vmatprep.subr.mxu0 0.0
    %807 = vmatpush1.msra.mxu0 0.0
    %808 = vmatprep.subr.mxu0 0.0
    %809 = vmatpush1.msra.mxu0 0.0
    %810 = vmatprep.subr.mxu0 0.0
    %811 = vmatpush1.msra.mxu0 0.0
    %812 = vmatprep.subr.mxu0 0.0
    %813 = vmatpush1.msra.mxu0 0.0
    %814 = vmatprep.subr.mxu0 0.0
    %815 = vmatpush1.msra.mxu0 0.0
    %816 = vmatprep.subr.mxu0 0.0
    %817 = vmatpush1.msra.mxu0 0.0
    %818 = vmatprep.subr.mxu0 0.0
    %819 = vmatpush1.msra.mxu0 0.0
    %820 = vmatprep.subr.mxu0 0.0
    %821 = vmatpush1.msra.mxu0 0.0
    %822 = vmatprep.subr.mxu0 0.0
    %823 = vmatpush1.msra.mxu0 0.0
    %824 = vmatprep.subr.mxu0 0.0
    %825 = vmatpush1.msra.mxu0 0.0
    %826 = vmatprep.subr.mxu0 0.0
    %827 = vmatpush1.msra.mxu0 0.0
    %828 = vmatprep.subr.mxu0 0.0
    %829 = vmatpush1.msra.mxu0 0.0
    %830 = vmatprep.subr.mxu0 0.0
    %831 = vmatpush1.msra.mxu0 0.0
    %832 = vmatprep.subr.mxu0 0.0
    %833 = vmatpush1.msra.mxu0 0.0
    %834 = vmatprep.subr.mxu0 0.0
    %835 = vmatpush1.msra.mxu0 0.0
    %836 = vmatprep.subr.mxu0 0.0
    %837 = vmatpush1.msra.mxu0 0.0
    %838 = vmatprep.subr.mxu0 0.0
    %839 = vmatpush1.msra.mxu0 0.0
    %840 = vmatprep.mubr.f32.mxu0 0.0
    %841 = vmatmul.mubr.f32.gmra.mrb[0].mxu0 %v772
    %v842 = vpop.f32.mrb[0].mxu0
    %v843 = vadd.f32 0.0, %v842
    %v844 = vpop.f32.mrb[0].mxu0
    %845 = vmatprep.mubr.f32.mxu0 0.0
    %846 = vmatmul.mubr.f32.gmra.mrb[0].mxu0 %v774
    %v847 = vpop.f32.mrb[0].mxu0
    %v848 = vadd.f32 0.0, %v847
    %v849 = vpop.f32.mrb[0].mxu0
    %850 = vdwg.mxu0
    %v851 = vadd.f32 %v441, %v843
    %v852 = vadd.f32 %v446, %v848
    %v853 = vxor.u32 %v851, 2147483648
    %v854 = vxor.u32 %v852, 2147483648
    %v855 = vmul.f32 %v853, 1.442695
    %v856 = vpow.pop %v855
    %v857 = vmul.f32 %v854, 1.442695
    %v858 = vpow.pop %v857
    %v859 = vadd.f32 %v856, 1.0
    %v860 = vadd.f32 %v858, 1.0
    %v861 = vrcp.pop %v859
    %v862 = vmul.f32 1.0, %v861
    %v863 = vrcp.pop %v860
    %v864 = vmul.f32 1.0, %v863
    %v865 = vtanh.pop %v851
    %v866 = vtanh.pop %v852
    %v867 = vmul.f32 %v862, %v752
    %v868 = vmul.f32 %v864, %v753
    %871 = vrot.lane.b32.xlu0 %v865, 64
    %v872 = vpop.permute.xlu0 %871
    %873 = vrot.lane.b32.xlu0 %v866, 64
    %v874 = vpop.permute.xlu0 %873
    %v877 = vmul.f32 %v862, %v872
    %v878 = vmul.f32 %v864, %v874
    %881 = vrot.lane.b32.xlu0 %v877, 32
    %v882 = vpop.permute.xlu0 %881
    %883 = vrot.lane.b32.xlu0 %v878, 32
    %v884 = vpop.permute.xlu0 %883
    %v887 = vadd.f32 %v867, %v882
    %v888 = vadd.f32 %v868, %v884
    %v889 = vtanh.pop %v887
    %v890 = vtanh.pop %v888
    %893 = vrot.lane.b32.xlu0 %v889, 64
    %v894 = vpop.permute.xlu0 %893
    %895 = vrot.lane.b32.xlu0 %v890, 64
    %v896 = vpop.permute.xlu0 %895
    %v899 = vmul.f32 %v862, %v894
    %v900 = vmul.f32 %v864, %v896
    %903 = vrot.lane.b32.xlu0 %v899, 32
    %v904 = vpop.permute.xlu0 %903
    %905 = vrot.lane.b32.xlu0 %v900, 32
    %v906 = vpop.permute.xlu0 %905
    %v907 = vsel %vm305, %v904, 0
    %v909 = vsel %vm305, %v906, 0
    %911 = vmatprep.subr.mxu0 0.0
    %912 = vmatpush1.msra.mxu0 %v499
    %913 = vmatprep.subr.mxu0 0.0
    %914 = vmatpush1.msra.mxu0 %v500
    %915 = vmatprep.subr.mxu0 0.0
    %916 = vmatpush1.msra.mxu0 %v501
    %917 = vmatprep.subr.mxu0 0.0
    %918 = vmatpush1.msra.mxu0 %v502
    %919 = vmatprep.subr.mxu0 0.0
    %920 = vmatpush1.msra.mxu0 0.0
    %921 = vmatprep.subr.mxu0 0.0
    %922 = vmatpush1.msra.mxu0 0.0
    %923 = vmatprep.subr.mxu0 0.0
    %924 = vmatpush1.msra.mxu0 0.0
    %925 = vmatprep.subr.mxu0 0.0
    %926 = vmatpush1.msra.mxu0 0.0
    %927 = vmatprep.subr.mxu0 0.0
    %928 = vmatpush1.msra.mxu0 0.0
    %929 = vmatprep.subr.mxu0 0.0
    %930 = vmatpush1.msra.mxu0 0.0
    %931 = vmatprep.subr.mxu0 0.0
    %932 = vmatpush1.msra.mxu0 0.0
    %933 = vmatprep.subr.mxu0 0.0
    %934 = vmatpush1.msra.mxu0 0.0
    %935 = vmatprep.subr.mxu0 0.0
    %936 = vmatpush1.msra.mxu0 0.0
    %937 = vmatprep.subr.mxu0 0.0
    %938 = vmatpush1.msra.mxu0 0.0
    %939 = vmatprep.subr.mxu0 0.0
    %940 = vmatpush1.msra.mxu0 0.0
    %941 = vmatprep.subr.mxu0 0.0
    %942 = vmatpush1.msra.mxu0 0.0
    %943 = vmatprep.subr.mxu0 0.0
    %944 = vmatpush1.msra.mxu0 0.0
    %945 = vmatprep.subr.mxu0 0.0
    %946 = vmatpush1.msra.mxu0 0.0
    %947 = vmatprep.subr.mxu0 0.0
    %948 = vmatpush1.msra.mxu0 0.0
    %949 = vmatprep.subr.mxu0 0.0
    %950 = vmatpush1.msra.mxu0 0.0
    %951 = vmatprep.subr.mxu0 0.0
    %952 = vmatpush1.msra.mxu0 0.0
    %953 = vmatprep.subr.mxu0 0.0
    %954 = vmatpush1.msra.mxu0 0.0
    %955 = vmatprep.subr.mxu0 0.0
    %956 = vmatpush1.msra.mxu0 0.0
    %957 = vmatprep.subr.mxu0 0.0
    %958 = vmatpush1.msra.mxu0 0.0
    %959 = vmatprep.subr.mxu0 0.0
    %960 = vmatpush1.msra.mxu0 0.0
    %961 = vmatprep.subr.mxu0 0.0
    %962 = vmatpush1.msra.mxu0 0.0
    %963 = vmatprep.subr.mxu0 0.0
    %964 = vmatpush1.msra.mxu0 0.0
    %965 = vmatprep.subr.mxu0 0.0
    %966 = vmatpush1.msra.mxu0 0.0
    %967 = vmatprep.subr.mxu0 0.0
    %968 = vmatpush1.msra.mxu0 0.0
    %969 = vmatprep.subr.mxu0 0.0
    %970 = vmatpush1.msra.mxu0 0.0
    %971 = vmatprep.subr.mxu0 0.0
    %972 = vmatpush1.msra.mxu0 0.0
    %973 = vmatprep.subr.mxu0 0.0
    %974 = vmatpush1.msra.mxu0 0.0
    %975 = vmatprep.mubr.f32.mxu0 0.0
    %976 = vmatmul.mubr.f32.gmra.mrb[0].mxu0 %v907
    %v977 = vpop.f32.mrb[0].mxu0
    %v978 = vadd.f32 0.0, %v977
    %v979 = vpop.f32.mrb[0].mxu0
    %980 = vmatprep.mubr.f32.mxu0 0.0
    %981 = vmatmul.mubr.f32.gmra.mrb[0].mxu0 %v909
    %v982 = vpop.f32.mrb[0].mxu0
    %v983 = vadd.f32 0.0, %v982
    %v984 = vpop.f32.mrb[0].mxu0
    %985 = vdwg.mxu0
    %v986 = vadd.f32 %v451, %v978
    %v987 = vadd.f32 %v456, %v983
    %v988 = vxor.u32 %v986, 2147483648
    %v989 = vxor.u32 %v987, 2147483648
    %v990 = vmul.f32 %v988, 1.442695
    %v991 = vpow.pop %v990
    %v992 = vmul.f32 %v989, 1.442695
    %v993 = vpow.pop %v992
    %v994 = vadd.f32 %v991, 1.0
    %v995 = vadd.f32 %v993, 1.0
    %v996 = vrcp.pop %v994
    %v997 = vmul.f32 1.0, %v996
    %v998 = vrcp.pop %v995
    %v999 = vmul.f32 1.0, %v998
    %v1000 = vtanh.pop %v986
    %v1001 = vtanh.pop %v987
    %v1002 = vmul.f32 %v997, %v887
    %v1003 = vmul.f32 %v999, %v888
    %1006 = vrot.lane.b32.xlu0 %v1000, 64
    %v1007 = vpop.permute.xlu0 %1006
    %1008 = vrot.lane.b32.xlu0 %v1001, 64
    %v1009 = vpop.permute.xlu0 %1008
    %v1012 = vmul.f32 %v997, %v1007
    %v1013 = vmul.f32 %v999, %v1009
    %1016 = vrot.lane.b32.xlu0 %v1012, 32
    %v1017 = vpop.permute.xlu0 %1016
    %1018 = vrot.lane.b32.xlu0 %v1013, 32
    %v1019 = vpop.permute.xlu0 %1018
    %v1022 = vadd.f32 %v1002, %v1017
    %v1023 = vadd.f32 %v1003, %v1019
    %v1024 = vtanh.pop %v1022
    %v1025 = vtanh.pop %v1023
    %1028 = vrot.lane.b32.xlu0 %v1024, 64
    %v1029 = vpop.permute.xlu0 %1028
    %1030 = vrot.lane.b32.xlu0 %v1025, 64
    %v1031 = vpop.permute.xlu0 %1030
    %v1034 = vmul.f32 %v997, %v1029
    %v1035 = vmul.f32 %v999, %v1031
    %1038 = vrot.lane.b32.xlu0 %v1034, 32
    %v1039 = vpop.permute.xlu0 %1038
    %1040 = vrot.lane.b32.xlu0 %v1035, 32
    %v1041 = vpop.permute.xlu0 %1040
    %v1042 = vsel %vm305, %v1039, 0
    %v1044 = vsel %vm305, %v1041, 0
    %1046 = vmatprep.subr.mxu0 0.0
    %1047 = vmatpush1.msra.mxu0 %v499
    %1048 = vmatprep.subr.mxu0 0.0
    %1049 = vmatpush1.msra.mxu0 %v500
    %1050 = vmatprep.subr.mxu0 0.0
    %1051 = vmatpush1.msra.mxu0 %v501
    %1052 = vmatprep.subr.mxu0 0.0
    %1053 = vmatpush1.msra.mxu0 %v502
    %1054 = vmatprep.subr.mxu0 0.0
    %1055 = vmatpush1.msra.mxu0 0.0
    %1056 = vmatprep.subr.mxu0 0.0
    %1057 = vmatpush1.msra.mxu0 0.0
    %1058 = vmatprep.subr.mxu0 0.0
    %1059 = vmatpush1.msra.mxu0 0.0
    %1060 = vmatprep.subr.mxu0 0.0
    %1061 = vmatpush1.msra.mxu0 0.0
    %1062 = vmatprep.subr.mxu0 0.0
    %1063 = vmatpush1.msra.mxu0 0.0
    %1064 = vmatprep.subr.mxu0 0.0
    %1065 = vmatpush1.msra.mxu0 0.0
    %1066 = vmatprep.subr.mxu0 0.0
    %1067 = vmatpush1.msra.mxu0 0.0
    %1068 = vmatprep.subr.mxu0 0.0
    %1069 = vmatpush1.msra.mxu0 0.0
    %1070 = vmatprep.subr.mxu0 0.0
    %1071 = vmatpush1.msra.mxu0 0.0
    %1072 = vmatprep.subr.mxu0 0.0
    %1073 = vmatpush1.msra.mxu0 0.0
    %1074 = vmatprep.subr.mxu0 0.0
    %1075 = vmatpush1.msra.mxu0 0.0
    %1076 = vmatprep.subr.mxu0 0.0
    %1077 = vmatpush1.msra.mxu0 0.0
    %1078 = vmatprep.subr.mxu0 0.0
    %1079 = vmatpush1.msra.mxu0 0.0
    %1080 = vmatprep.subr.mxu0 0.0
    %1081 = vmatpush1.msra.mxu0 0.0
    %1082 = vmatprep.subr.mxu0 0.0
    %1083 = vmatpush1.msra.mxu0 0.0
    %1084 = vmatprep.subr.mxu0 0.0
    %1085 = vmatpush1.msra.mxu0 0.0
    %1086 = vmatprep.subr.mxu0 0.0
    %1087 = vmatpush1.msra.mxu0 0.0
    %1088 = vmatprep.subr.mxu0 0.0
    %1089 = vmatpush1.msra.mxu0 0.0
    %1090 = vmatprep.subr.mxu0 0.0
    %1091 = vmatpush1.msra.mxu0 0.0
    %1092 = vmatprep.subr.mxu0 0.0
    %1093 = vmatpush1.msra.mxu0 0.0
    %1094 = vmatprep.subr.mxu0 0.0
    %1095 = vmatpush1.msra.mxu0 0.0
    %1096 = vmatprep.subr.mxu0 0.0
    %1097 = vmatpush1.msra.mxu0 0.0
    %1098 = vmatprep.subr.mxu0 0.0
    %1099 = vmatpush1.msra.mxu0 0.0
    %1100 = vmatprep.subr.mxu0 0.0
    %1101 = vmatpush1.msra.mxu0 0.0
    %1102 = vmatprep.subr.mxu0 0.0
    %1103 = vmatpush1.msra.mxu0 0.0
    %1104 = vmatprep.subr.mxu0 0.0
    %1105 = vmatpush1.msra.mxu0 0.0
    %1106 = vmatprep.subr.mxu0 0.0
    %1107 = vmatpush1.msra.mxu0 0.0
    %1108 = vmatprep.subr.mxu0 0.0
    %1109 = vmatpush1.msra.mxu0 0.0
    %1110 = vmatprep.mubr.f32.mxu0 0.0
    %1111 = vmatmul.mubr.f32.gmra.mrb[0].mxu0 %v1042
    %v1112 = vpop.f32.mrb[0].mxu0
    %v1113 = vadd.f32 0.0, %v1112
    %v1114 = vpop.f32.mrb[0].mxu0
    %1115 = vmatprep.mubr.f32.mxu0 0.0
    %1116 = vmatmul.mubr.f32.gmra.mrb[0].mxu0 %v1044
    %v1117 = vpop.f32.mrb[0].mxu0
    %v1118 = vadd.f32 0.0, %v1117
    %v1119 = vpop.f32.mrb[0].mxu0
    %1120 = vdwg.mxu0
    %v1121 = vadd.f32 %v461, %v1113
    %v1122 = vadd.f32 %v466, %v1118
    %v1123 = vxor.u32 %v1121, 2147483648
    %v1124 = vxor.u32 %v1122, 2147483648
    %v1125 = vmul.f32 %v1123, 1.442695
    %v1126 = vpow.pop %v1125
    %v1127 = vmul.f32 %v1124, 1.442695
    %v1128 = vpow.pop %v1127
    %v1129 = vadd.f32 %v1126, 1.0
    %v1130 = vadd.f32 %v1128, 1.0
    %v1131 = vrcp.pop %v1129
    %v1132 = vmul.f32 1.0, %v1131
    %v1133 = vrcp.pop %v1130
    %v1134 = vmul.f32 1.0, %v1133
    %v1135 = vtanh.pop %v1121
    %v1136 = vtanh.pop %v1122
    %v1137 = vmul.f32 %v1132, %v1022
    %v1138 = vmul.f32 %v1134, %v1023
    %1141 = vrot.lane.b32.xlu0 %v1135, 64
    %v1142 = vpop.permute.xlu0 %1141
    %1143 = vrot.lane.b32.xlu0 %v1136, 64
    %v1144 = vpop.permute.xlu0 %1143
    %v1147 = vmul.f32 %v1132, %v1142
    %v1148 = vmul.f32 %v1134, %v1144
    %1151 = vrot.lane.b32.xlu0 %v1147, 32
    %v1152 = vpop.permute.xlu0 %1151
    %1153 = vrot.lane.b32.xlu0 %v1148, 32
    %v1154 = vpop.permute.xlu0 %1153
    %v1157 = vadd.f32 %v1137, %v1152
    %v1158 = vadd.f32 %v1138, %v1154
    %v1159 = vtanh.pop %v1157
    %v1160 = vtanh.pop %v1158
    %1163 = vrot.lane.b32.xlu0 %v1159, 64
    %v1164 = vpop.permute.xlu0 %1163
    %1165 = vrot.lane.b32.xlu0 %v1160, 64
    %v1166 = vpop.permute.xlu0 %1165
    %v1169 = vmul.f32 %v1132, %v1164
    %v1170 = vmul.f32 %v1134, %v1166
    %1173 = vrot.lane.b32.xlu0 %v1169, 32
    %v1174 = vpop.permute.xlu0 %1173
    %1175 = vrot.lane.b32.xlu0 %v1170, 32
    %v1176 = vpop.permute.xlu0 %1175
    %v1177 = vsel %vm305, %v1174, 0
    %v1179 = vsel %vm305, %v1176, 0
    %1181 = vmatprep.subr.mxu0 0.0
    %1182 = vmatpush1.msra.mxu0 %v499
    %1183 = vmatprep.subr.mxu0 0.0
    %1184 = vmatpush1.msra.mxu0 %v500
    %1185 = vmatprep.subr.mxu0 0.0
    %1186 = vmatpush1.msra.mxu0 %v501
    %1187 = vmatprep.subr.mxu0 0.0
    %1188 = vmatpush1.msra.mxu0 %v502
    %1189 = vmatprep.subr.mxu0 0.0
    %1190 = vmatpush1.msra.mxu0 0.0
    %1191 = vmatprep.subr.mxu0 0.0
    %1192 = vmatpush1.msra.mxu0 0.0
    %1193 = vmatprep.subr.mxu0 0.0
    %1194 = vmatpush1.msra.mxu0 0.0
    %1195 = vmatprep.subr.mxu0 0.0
    %1196 = vmatpush1.msra.mxu0 0.0
    %1197 = vmatprep.subr.mxu0 0.0
    %1198 = vmatpush1.msra.mxu0 0.0
    %1199 = vmatprep.subr.mxu0 0.0
    %1200 = vmatpush1.msra.mxu0 0.0
    %1201 = vmatprep.subr.mxu0 0.0
    %1202 = vmatpush1.msra.mxu0 0.0
    %1203 = vmatprep.subr.mxu0 0.0
    %1204 = vmatpush1.msra.mxu0 0.0
    %1205 = vmatprep.subr.mxu0 0.0
    %1206 = vmatpush1.msra.mxu0 0.0
    %1207 = vmatprep.subr.mxu0 0.0
    %1208 = vmatpush1.msra.mxu0 0.0
    %1209 = vmatprep.subr.mxu0 0.0
    %1210 = vmatpush1.msra.mxu0 0.0
    %1211 = vmatprep.subr.mxu0 0.0
    %1212 = vmatpush1.msra.mxu0 0.0
    %1213 = vmatprep.subr.mxu0 0.0
    %1214 = vmatpush1.msra.mxu0 0.0
    %1215 = vmatprep.subr.mxu0 0.0
    %1216 = vmatpush1.msra.mxu0 0.0
    %1217 = vmatprep.subr.mxu0 0.0
    %1218 = vmatpush1.msra.mxu0 0.0
    %1219 = vmatprep.subr.mxu0 0.0
    %1220 = vmatpush1.msra.mxu0 0.0
    %1221 = vmatprep.subr.mxu0 0.0
    %1222 = vmatpush1.msra.mxu0 0.0
    %1223 = vmatprep.subr.mxu0 0.0
    %1224 = vmatpush1.msra.mxu0 0.0
    %1225 = vmatprep.subr.mxu0 0.0
    %1226 = vmatpush1.msra.mxu0 0.0
    %1227 = vmatprep.subr.mxu0 0.0
    %1228 = vmatpush1.msra.mxu0 0.0
    %1229 = vmatprep.subr.mxu0 0.0
    %1230 = vmatpush1.msra.mxu0 0.0
    %1231 = vmatprep.subr.mxu0 0.0
    %1232 = vmatpush1.msra.mxu0 0.0
    %1233 = vmatprep.subr.mxu0 0.0
    %1234 = vmatpush1.msra.mxu0 0.0
    %1235 = vmatprep.subr.mxu0 0.0
    %1236 = vmatpush1.msra.mxu0 0.0
    %1237 = vmatprep.subr.mxu0 0.0
    %1238 = vmatpush1.msra.mxu0 0.0
    %1239 = vmatprep.subr.mxu0 0.0
    %1240 = vmatpush1.msra.mxu0 0.0
    %1241 = vmatprep.subr.mxu0 0.0
    %1242 = vmatpush1.msra.mxu0 0.0
    %1243 = vmatprep.subr.mxu0 0.0
    %1244 = vmatpush1.msra.mxu0 0.0
    %1245 = vmatprep.mubr.f32.mxu0 0.0
    %1246 = vmatmul.mubr.f32.gmra.mrb[0].mxu0 %v1177
    %v1247 = vpop.f32.mrb[0].mxu0
    %v1248 = vadd.f32 0.0, %v1247
    %v1249 = vpop.f32.mrb[0].mxu0
    %1250 = vmatprep.mubr.f32.mxu0 0.0
    %1251 = vmatmul.mubr.f32.gmra.mrb[0].mxu0 %v1179
    %v1252 = vpop.f32.mrb[0].mxu0
    %v1253 = vadd.f32 0.0, %v1252
    %v1254 = vpop.f32.mrb[0].mxu0
    %1255 = vdwg.mxu0
    %v1256 = vadd.f32 %v471, %v1248
    %v1257 = vadd.f32 %v476, %v1253
    %v1258 = vxor.u32 %v1256, 2147483648
    %v1259 = vxor.u32 %v1257, 2147483648
    %v1260 = vmul.f32 %v1258, 1.442695
    %v1261 = vpow.pop %v1260
    %v1262 = vmul.f32 %v1259, 1.442695
    %v1263 = vpow.pop %v1262
    %v1264 = vadd.f32 %v1261, 1.0
    %v1265 = vadd.f32 %v1263, 1.0
    %v1266 = vrcp.pop %v1264
    %v1267 = vmul.f32 1.0, %v1266
    %v1268 = vrcp.pop %v1265
    %v1269 = vmul.f32 1.0, %v1268
    %v1270 = vtanh.pop %v1256
    %v1271 = vtanh.pop %v1257
    %v1272 = vmul.f32 %v1267, %v1157
    %v1273 = vmul.f32 %v1269, %v1158
    %1276 = vrot.lane.b32.xlu0 %v1270, 64
    %v1277 = vpop.permute.xlu0 %1276
    %1278 = vrot.lane.b32.xlu0 %v1271, 64
    %v1279 = vpop.permute.xlu0 %1278
    %v1282 = vmul.f32 %v1267, %v1277
    %v1283 = vmul.f32 %v1269, %v1279
    %1286 = vrot.lane.b32.xlu0 %v1282, 32
    %v1287 = vpop.permute.xlu0 %1286
    %1288 = vrot.lane.b32.xlu0 %v1283, 32
    %v1289 = vpop.permute.xlu0 %1288
    %v1292 = vadd.f32 %v1272, %v1287
    %v1293 = vadd.f32 %v1273, %v1289
    %v1294 = vtanh.pop %v1292
    %v1295 = vtanh.pop %v1293
    %1298 = vrot.lane.b32.xlu0 %v1294, 64
    %v1299 = vpop.permute.xlu0 %1298
    %1300 = vrot.lane.b32.xlu0 %v1295, 64
    %v1301 = vpop.permute.xlu0 %1300
    %v1304 = vmul.f32 %v1267, %v1299
    %v1305 = vmul.f32 %v1269, %v1301
    %1308 = vrot.lane.b32.xlu0 %v1304, 32
    %v1309 = vpop.permute.xlu0 %1308
    %1310 = vrot.lane.b32.xlu0 %v1305, 32
    %v1311 = vpop.permute.xlu0 %1310
    %v1312 = vsel %vm305, %v1309, 0
    %v1314 = vsel %vm305, %v1311, 0
    %1316 = vmatprep.subr.mxu0 0.0
    %1317 = vmatpush1.msra.mxu0 %v499
    %1318 = vmatprep.subr.mxu0 0.0
    %1319 = vmatpush1.msra.mxu0 %v500
    %1320 = vmatprep.subr.mxu0 0.0
    %1321 = vmatpush1.msra.mxu0 %v501
    %1322 = vmatprep.subr.mxu0 0.0
    %1323 = vmatpush1.msra.mxu0 %v502
    %1324 = vmatprep.subr.mxu0 0.0
    %1325 = vmatpush1.msra.mxu0 0.0
    %1326 = vmatprep.subr.mxu0 0.0
    %1327 = vmatpush1.msra.mxu0 0.0
    %1328 = vmatprep.subr.mxu0 0.0
    %1329 = vmatpush1.msra.mxu0 0.0
    %1330 = vmatprep.subr.mxu0 0.0
    %1331 = vmatpush1.msra.mxu0 0.0
    %1332 = vmatprep.subr.mxu0 0.0
    %1333 = vmatpush1.msra.mxu0 0.0
    %1334 = vmatprep.subr.mxu0 0.0
    %1335 = vmatpush1.msra.mxu0 0.0
    %1336 = vmatprep.subr.mxu0 0.0
    %1337 = vmatpush1.msra.mxu0 0.0
    %1338 = vmatprep.subr.mxu0 0.0
    %1339 = vmatpush1.msra.mxu0 0.0
    %1340 = vmatprep.subr.mxu0 0.0
    %1341 = vmatpush1.msra.mxu0 0.0
    %1342 = vmatprep.subr.mxu0 0.0
    %1343 = vmatpush1.msra.mxu0 0.0
    %1344 = vmatprep.subr.mxu0 0.0
    %1345 = vmatpush1.msra.mxu0 0.0
    %1346 = vmatprep.subr.mxu0 0.0
    %1347 = vmatpush1.msra.mxu0 0.0
    %1348 = vmatprep.subr.mxu0 0.0
    %1349 = vmatpush1.msra.mxu0 0.0
    %1350 = vmatprep.subr.mxu0 0.0
    %1351 = vmatpush1.msra.mxu0 0.0
    %1352 = vmatprep.subr.mxu0 0.0
    %1353 = vmatpush1.msra.mxu0 0.0
    %1354 = vmatprep.subr.mxu0 0.0
    %1355 = vmatpush1.msra.mxu0 0.0
    %1356 = vmatprep.subr.mxu0 0.0
    %1357 = vmatpush1.msra.mxu0 0.0
    %1358 = vmatprep.subr.mxu0 0.0
    %1359 = vmatpush1.msra.mxu0 0.0
    %1360 = vmatprep.subr.mxu0 0.0
    %1361 = vmatpush1.msra.mxu0 0.0
    %1362 = vmatprep.subr.mxu0 0.0
    %1363 = vmatpush1.msra.mxu0 0.0
    %1364 = vmatprep.subr.mxu0 0.0
    %1365 = vmatpush1.msra.mxu0 0.0
    %1366 = vmatprep.subr.mxu0 0.0
    %1367 = vmatpush1.msra.mxu0 0.0
    %1368 = vmatprep.subr.mxu0 0.0
    %1369 = vmatpush1.msra.mxu0 0.0
    %1370 = vmatprep.subr.mxu0 0.0
    %1371 = vmatpush1.msra.mxu0 0.0
    %1372 = vmatprep.subr.mxu0 0.0
    %1373 = vmatpush1.msra.mxu0 0.0
    %1374 = vmatprep.subr.mxu0 0.0
    %1375 = vmatpush1.msra.mxu0 0.0
    %1376 = vmatprep.subr.mxu0 0.0
    %1377 = vmatpush1.msra.mxu0 0.0
    %1378 = vmatprep.subr.mxu0 0.0
    %1379 = vmatpush1.msra.mxu0 0.0
    %1380 = vmatprep.mubr.f32.mxu0 0.0
    %1381 = vmatmul.mubr.f32.gmra.mrb[0].mxu0 %v1312
    %v1382 = vpop.f32.mrb[0].mxu0
    %v1383 = vadd.f32 0.0, %v1382
    %v1384 = vpop.f32.mrb[0].mxu0
    %1385 = vmatprep.mubr.f32.mxu0 0.0
    %1386 = vmatmul.mubr.f32.gmra.mrb[0].mxu0 %v1314
    %v1387 = vpop.f32.mrb[0].mxu0
    %v1388 = vadd.f32 0.0, %v1387
    %v1389 = vpop.f32.mrb[0].mxu0
    %1390 = vdwg.mxu0
    %v1391 = vadd.f32 %v481, %v1383
    %v1392 = vadd.f32 %v486, %v1388
    %v1393 = vxor.u32 %v1391, 2147483648
    %v1394 = vxor.u32 %v1392, 2147483648
    %v1395 = vmul.f32 %v1393, 1.442695
    %v1396 = vpow.pop %v1395
    %v1397 = vmul.f32 %v1394, 1.442695
    %v1398 = vpow.pop %v1397
    %v1399 = vadd.f32 %v1396, 1.0
    %v1400 = vadd.f32 %v1398, 1.0
    %v1401 = vrcp.pop %v1399
    %v1402 = vmul.f32 1.0, %v1401
    %v1403 = vrcp.pop %v1400
    %v1404 = vmul.f32 1.0, %v1403
    %v1405 = vtanh.pop %v1391
    %v1406 = vtanh.pop %v1392
    %v1407 = vmul.f32 %v1402, %v1292
    %v1408 = vmul.f32 %v1404, %v1293
    %1411 = vrot.lane.b32.xlu0 %v1405, 64
    %v1412 = vpop.permute.xlu0 %1411
    %1413 = vrot.lane.b32.xlu0 %v1406, 64
    %v1414 = vpop.permute.xlu0 %1413
    %v1417 = vmul.f32 %v1402, %v1412
    %v1418 = vmul.f32 %v1404, %v1414
    %1421 = vrot.lane.b32.xlu0 %v1417, 32
    %v1422 = vpop.permute.xlu0 %1421
    %1423 = vrot.lane.b32.xlu0 %v1418, 32
    %v1424 = vpop.permute.xlu0 %1423
    %v1427 = vadd.f32 %v1407, %v1422
    %v1428 = vadd.f32 %v1408, %v1424
    %v1429 = vtanh.pop %v1427
    %v1430 = vtanh.pop %v1428
    %1433 = vrot.lane.b32.xlu0 %v1429, 64
    %v1434 = vpop.permute.xlu0 %1433
    %1435 = vrot.lane.b32.xlu0 %v1430, 64
    %v1436 = vpop.permute.xlu0 %1435
    %v1439 = vmul.f32 %v1402, %v1434
    %v1440 = vmul.f32 %v1404, %v1436
    %1443 = vrot.lane.b32.xlu0 %v1439, 32
    %v1444 = vpop.permute.xlu0 %1443
    %1445 = vrot.lane.b32.xlu0 %v1440, 32
    %v1446 = vpop.permute.xlu0 %1445
    %v1447 = vsel %vm305, %v1444, 0
    %v1449 = vsel %vm305, %v1446, 0
    %1451 = vmatprep.subr.mxu0 0.0
    %1452 = vmatpush1.msra.mxu0 %v499
    %1453 = vmatprep.subr.mxu0 0.0
    %1454 = vmatpush1.msra.mxu0 %v500
    %1455 = vmatprep.subr.mxu0 0.0
    %1456 = vmatpush1.msra.mxu0 %v501
    %1457 = vmatprep.subr.mxu0 0.0
    %1458 = vmatpush1.msra.mxu0 %v502
    %1459 = vmatprep.subr.mxu0 0.0
    %1460 = vmatpush1.msra.mxu0 0.0
    %1461 = vmatprep.subr.mxu0 0.0
    %1462 = vmatpush1.msra.mxu0 0.0
    %1463 = vmatprep.subr.mxu0 0.0
    %1464 = vmatpush1.msra.mxu0 0.0
    %1465 = vmatprep.subr.mxu0 0.0
    %1466 = vmatpush1.msra.mxu0 0.0
    %1467 = vmatprep.subr.mxu0 0.0
    %1468 = vmatpush1.msra.mxu0 0.0
    %1469 = vmatprep.subr.mxu0 0.0
    %1470 = vmatpush1.msra.mxu0 0.0
    %1471 = vmatprep.subr.mxu0 0.0
    %1472 = vmatpush1.msra.mxu0 0.0
    %1473 = vmatprep.subr.mxu0 0.0
    %1474 = vmatpush1.msra.mxu0 0.0
    %1475 = vmatprep.subr.mxu0 0.0
    %1476 = vmatpush1.msra.mxu0 0.0
    %1477 = vmatprep.subr.mxu0 0.0
    %1478 = vmatpush1.msra.mxu0 0.0
    %1479 = vmatprep.subr.mxu0 0.0
    %1480 = vmatpush1.msra.mxu0 0.0
    %1481 = vmatprep.subr.mxu0 0.0
    %1482 = vmatpush1.msra.mxu0 0.0
    %1483 = vmatprep.subr.mxu0 0.0
    %1484 = vmatpush1.msra.mxu0 0.0
    %1485 = vmatprep.subr.mxu0 0.0
    %1486 = vmatpush1.msra.mxu0 0.0
    %1487 = vmatprep.subr.mxu0 0.0
    %1488 = vmatpush1.msra.mxu0 0.0
    %1489 = vmatprep.subr.mxu0 0.0
    %1490 = vmatpush1.msra.mxu0 0.0
    %1491 = vmatprep.subr.mxu0 0.0
    %1492 = vmatpush1.msra.mxu0 0.0
    %1493 = vmatprep.subr.mxu0 0.0
    %1494 = vmatpush1.msra.mxu0 0.0
    %1495 = vmatprep.subr.mxu0 0.0
    %1496 = vmatpush1.msra.mxu0 0.0
    %1497 = vmatprep.subr.mxu0 0.0
    %1498 = vmatpush1.msra.mxu0 0.0
    %1499 = vmatprep.subr.mxu0 0.0
    %1500 = vmatpush1.msra.mxu0 0.0
    %1501 = vmatprep.subr.mxu0 0.0
    %1502 = vmatpush1.msra.mxu0 0.0
    %1503 = vmatprep.subr.mxu0 0.0
    %1504 = vmatpush1.msra.mxu0 0.0
    %1505 = vmatprep.subr.mxu0 0.0
    %1506 = vmatpush1.msra.mxu0 0.0
    %1507 = vmatprep.subr.mxu0 0.0
    %1508 = vmatpush1.msra.mxu0 0.0
    %1509 = vmatprep.subr.mxu0 0.0
    %1510 = vmatpush1.msra.mxu0 0.0
    %1511 = vmatprep.subr.mxu0 0.0
    %1512 = vmatpush1.msra.mxu0 0.0
    %1513 = vmatprep.subr.mxu0 0.0
    %1514 = vmatpush1.msra.mxu0 0.0
    %1515 = vmatprep.mubr.f32.mxu0 0.0
    %1516 = vmatmul.mubr.f32.gmra.mrb[0].mxu0 %v1447
    %v1517 = vpop.f32.mrb[0].mxu0
    %v1518 = vadd.f32 0.0, %v1517
    %v1519 = vpop.f32.mrb[0].mxu0
    %1520 = vmatprep.mubr.f32.mxu0 0.0
    %1521 = vmatmul.mubr.f32.gmra.mrb[0].mxu0 %v1449
    %v1522 = vpop.f32.mrb[0].mxu0
    %v1523 = vadd.f32 0.0, %v1522
    %v1524 = vpop.f32.mrb[0].mxu0
    %1525 = vdwg.mxu0
    %v1526 = vadd.f32 %v491, %v1518
    %v1527 = vadd.f32 %v496, %v1523
    %v1528 = vxor.u32 %v1526, 2147483648
    %v1529 = vxor.u32 %v1527, 2147483648
    %v1530 = vmul.f32 %v1528, 1.442695
    %v1531 = vpow.pop %v1530
    %v1532 = vmul.f32 %v1529, 1.442695
    %v1533 = vpow.pop %v1532
    %v1534 = vadd.f32 %v1531, 1.0
    %v1535 = vadd.f32 %v1533, 1.0
    %v1536 = vrcp.pop %v1534
    %v1537 = vmul.f32 1.0, %v1536
    %v1538 = vrcp.pop %v1535
    %v1539 = vmul.f32 1.0, %v1538
    %v1540 = vtanh.pop %v1526
    %v1541 = vtanh.pop %v1527
    %v1542 = vmul.f32 %v1537, %v1427
    %v1543 = vmul.f32 %v1539, %v1428
    %1546 = vrot.lane.b32.xlu0 %v1540, 64
    %v1547 = vpop.permute.xlu0 %1546
    %1548 = vrot.lane.b32.xlu0 %v1541, 64
    %v1549 = vpop.permute.xlu0 %1548
    %v1552 = vmul.f32 %v1537, %v1547
    %v1553 = vmul.f32 %v1539, %v1549
    %1556 = vrot.lane.b32.xlu0 %v1552, 32
    %v1557 = vpop.permute.xlu0 %1556
    %1558 = vrot.lane.b32.xlu0 %v1553, 32
    %v1559 = vpop.permute.xlu0 %1558
    %v1562 = vadd.f32 %v1542, %v1557
    %v1563 = vadd.f32 %v1543, %v1559
    %v1564 = vtanh.pop %v1562
    %v1565 = vtanh.pop %v1563
    %1568 = vrot.lane.b32.xlu0 %v1564, 64
    %v1569 = vpop.permute.xlu0 %1568
    %1570 = vrot.lane.b32.xlu0 %v1565, 64
    %v1571 = vpop.permute.xlu0 %1570
    %v1574 = vmul.f32 %v1537, %v1569
    %v1575 = vmul.f32 %v1539, %v1571
    %1578 = vrot.lane.b32.xlu0 %v1574, 32
    %v1579 = vpop.permute.xlu0 %1578
    %1580 = vrot.lane.b32.xlu0 %v1575, 32
    %v1581 = vpop.permute.xlu0 %1580
    %1584 = vst.msk [vmem:[#allocation2] sm:$0xff] %vm305, %v1579
    %1585 = vst.msk [vmem:[#allocation2 + $0x8] sm:$0xff] %vm305, %v1581
    // Predicated region
    $region26: #{tpu_custom_call.1} parent=1 // pred_check
      _
    $region27: #{tpu_custom_call.1} parent=1 // pred_check_branch
      %1587 = sbr.rel (0) target = $region29
    $region28: #{tpu_custom_call.1} parent=1 // pred_region
      %s1589 = ssub.s32 256, 256
      %1590 = vsyncadd [#allocation3], %s1589
      %s1591 = sshll.u32 [#allocation2], 4
      %s1592 = int_to_ptr.vmem [resolvable:$true] %s1591
      %1597 = dma.vmem_to_hbm [thread:$0]  %s1592, 256, %s6, [#allocation3], 128, 128, 8
    $region29: #{tpu_custom_call.1} parent=1 // pred_fallthru
      _
    // Predicated region
    $region30: #{tpu_custom_call.1} parent=1 // pred_check
      _
    $region31: #{tpu_custom_call.1} parent=1 // pred_check_branch
      %1599 = sbr.rel (0) target = $region33
    $region32: #{tpu_custom_call.1} parent=1 // pred_region
      %1600 = dma.done [#allocation3], 256
    $region33: #{tpu_custom_call.1} parent=1 // pred_fallthru
      _
    %1601 = vsyncpa [#allocation3], 1

</llo_original>
